<compile_context>
chip_gen: v7x
topology: tpu7x:2x2x1
jax: 0.10.0
libtpu: 0.0.40
codegen_flags: <defaults>
</compile_context>

<pallas_src>
import functools

import jax
import jax.numpy as jnp
import numpy as np
from jax.experimental import pallas as pl
from jax.experimental.pallas import tpu as pltpu


# ----------------------------- helpers ------------------------------------- #
def _layer_norm(x, gamma, beta, eps=1e-6):
    mu = jnp.mean(x, axis=-1, keepdims=True)
    var = jnp.mean((x - mu) ** 2, axis=-1, keepdims=True)
    return (x - mu) * jax.lax.rsqrt(var + eps) * gamma + beta


# --------------------- fused encoder-layer kernel --------------------------- #
def _encoder_layer_kernel(x_ref, wqkv_ref, wo_ref, w1_ref, b1_ref, w2_ref,
                          b2_ref, g1_ref, be1_ref, g2_ref, be2_ref,
                          out_ref, attn_ref, *, n_head, d_k, d_v):
    H = n_head
    x = x_ref[0]                                   # (S, D)
    S, D = x.shape

    # --- fused QKV projection: one wide MXU matmul instead of three ---------
    xw = jnp.dot(x, wqkv_ref[...], preferred_element_type=jnp.float32)
    q_all = xw[:, : H * d_k]                       # (S, H*dk)
    k_all = xw[:, H * d_k: 2 * H * d_k]            # (S, H*dk)
    v_all = xw[:, 2 * H * d_k:]                    # (S, H*dv)

    # --- all heads at once: batched score matmul, no explicit transpose -----
    q_h = jnp.stack([q_all[:, h * d_k:(h + 1) * d_k] for h in range(H)], axis=0)
    k_h = jnp.stack([k_all[:, h * d_k:(h + 1) * d_k] for h in range(H)], axis=0)
    s = jax.lax.dot_general(q_h, k_h, (((2,), (2,)), ((0,), (0,))),
                            preferred_element_type=jnp.float32)      # (H,S,S)
    s = s * (1.0 / (d_k ** 0.5))
    s = s - jnp.max(s, axis=-1, keepdims=True)
    e = jnp.exp(s)
    p = e * pl.reciprocal(jnp.sum(e, axis=-1, keepdims=True), approx=False)
    attn_ref[0] = p                                # single store of all heads

    # --- quirk 1: einsum('bnqk,bvnd->bnqd') == rowsum_k(p) (x) colsum_v(v) ---
    rowsum = jnp.sum(p, axis=-1, keepdims=True)    # (H, S, 1)
    vsum = jnp.sum(v_all, axis=0, keepdims=True)   # (1, H*dv)
    # q2[h*S + s, :] == qkv[h, s, :]  (row-major flatten of (H, S, dv))
    q2 = jnp.concatenate(
        [rowsum[h] * vsum[:, h * d_v:(h + 1) * d_v] for h in range(H)], axis=0)

    # --- quirk 2: .view(B, S, H*dv) without transpose ------------------------
    # ao[s', c*dv + d] = q2[s'*H + c, d]; realize the row gather with one-hot
    # selection matmuls (MXU), then a single fc_out matmul.
    row_i = jax.lax.broadcasted_iota(jnp.int32, (S, H * S), 0)
    col_i = jax.lax.broadcasted_iota(jnp.int32, (S, H * S), 1)
    ao = jnp.concatenate(
        [jnp.dot((col_i == row_i * H + c).astype(jnp.float32), q2,
                 preferred_element_type=jnp.float32) for c in range(H)],
        axis=1)                                    # (S, H*dv)
    o = jnp.dot(ao, wo_ref[...], preferred_element_type=jnp.float32)  # (S, D)

    # --- MHA residual + LN, FeedForward + residual + LN (dropout == id) -----
    x1 = _layer_norm(o + x, g1_ref[...], be1_ref[...])
    hid = jnp.dot(x1, w1_ref[...], preferred_element_type=jnp.float32) + b1_ref[...]
    hid = jnp.maximum(hid, 0.0)
    f = jnp.dot(hid, w2_ref[...], preferred_element_type=jnp.float32) + b2_ref[...]
    out_ref[0] = _layer_norm(f + x1, g2_ref[...], be2_ref[...])


# ------------------------------- wrapper ------------------------------------ #
def encoder_layer(x, params, *, n_head, d_k, d_v):
    B, S, D = x.shape
    d_inner = params["w1"].shape[1]

    # fuse the three projection weights once, outside the kernel
    w_qkv = jnp.concatenate([params["wq"], params["wk"], params["wv"]], axis=1)

    full = lambda shape: pl.BlockSpec(shape, lambda b: (0,) * len(shape))

    out, attn = pl.pallas_call(
        functools.partial(_encoder_layer_kernel, n_head=n_head, d_k=d_k, d_v=d_v),
        out_shape=(
            jax.ShapeDtypeStruct((B, S, D), jnp.float32),
            jax.ShapeDtypeStruct((B, n_head, S, S), jnp.float32),
        ),
        grid=(B,),
        in_specs=[
            pl.BlockSpec((1, S, D), lambda b: (b, 0, 0)),       # x
            full((D, n_head * (2 * d_k + d_v))),                # fused wq|wk|wv
            full((n_head * d_v, D)),                            # wo
            full((D, d_inner)),                                 # w1
            full((1, d_inner)),                                 # b1
            full((d_inner, D)),                                 # w2
            full((1, D)),                                       # b2
            full((1, D)), full((1, D)),                         # g1, be1
            full((1, D)), full((1, D)),                         # g2, be2
        ],
        out_specs=[
            pl.BlockSpec((1, S, D), lambda b: (b, 0, 0)),
            pl.BlockSpec((1, n_head, S, S), lambda b: (b, 0, 0, 0)),
        ],
        compiler_params=pltpu.CompilerParams(dimension_semantics=("parallel",)),
    )(x, w_qkv, params["wo"], params["w1"], params["b1"], params["w2"],
      params["b2"], params["g1"], params["be1"], params["g2"], params["be2"])

    return out, attn


# ---------------------------- pure-JAX reference ----------------------------- #
def _reference(x, p, *, n_head, d_k, d_v):
    B, S, D = x.shape
    q = (x @ p["wq"]).reshape(B, S, n_head, d_k)
    k = (x @ p["wk"]).reshape(B, S, n_head, d_k)
    v = (x @ p["wv"]).reshape(B, S, n_head, d_v)
    qk = jnp.einsum("bqnd,bknd->bnqk", q, k) / d_k ** 0.5
    qk = jax.nn.softmax(qk, axis=-1)
    attn = qk
    qkv = jnp.einsum("bnqk,bvnd->bnqd", qk, v)
    out = qkv.reshape(B, S, n_head * d_v)          # no-transpose view, as in torch
    out = out @ p["wo"]
    x1 = _layer_norm(out + x, p["g1"], p["be1"])
    hid = jnp.maximum(x1 @ p["w1"] + p["b1"], 0.0)
    f = hid @ p["w2"] + p["b2"]
    y = _layer_norm(f + x1, p["g2"], p["be2"])
    return y, attn


# ----------------------------------- main ------------------------------------ #
if __name__ == "__main__":
    B, S = 2, 8
    D_MODEL, D_INNER = 32, 64
    N_HEAD, D_K, D_V = 2, 16, 16

    key = jax.random.PRNGKey(0)
    ks = jax.random.split(key, 10)
    x = jax.random.normal(ks[0], (B, S, D_MODEL), dtype=jnp.float32)

    params = {
        "wq": 0.1 * jax.random.normal(ks[1], (D_MODEL, N_HEAD * D_K), jnp.float32),
        "wk": 0.1 * jax.random.normal(ks[2], (D_MODEL, N_HEAD * D_K), jnp.float32),
        "wv": 0.1 * jax.random.normal(ks[3], (D_MODEL, N_HEAD * D_V), jnp.float32),
        "wo": 0.1 * jax.random.normal(ks[4], (N_HEAD * D_V, D_MODEL), jnp.float32),
        "w1": 0.1 * jax.random.normal(ks[5], (D_MODEL, D_INNER), jnp.float32),
        "b1": 0.01 * jax.random.normal(ks[6], (1, D_INNER), jnp.float32),
        "w2": 0.1 * jax.random.normal(ks[7], (D_INNER, D_MODEL), jnp.float32),
        "b2": 0.01 * jax.random.normal(ks[8], (1, D_MODEL), jnp.float32),
        "g1": jnp.ones((1, D_MODEL), jnp.float32),
        "be1": jnp.zeros((1, D_MODEL), jnp.float32),
        "g2": jnp.ones((1, D_MODEL), jnp.float32),
        "be2": jnp.zeros((1, D_MODEL), jnp.float32),
    }

    out, attn = encoder_layer(x, params, n_head=N_HEAD, d_k=D_K, d_v=D_V)
    out, attn = jax.block_until_ready((out, attn))

    ref_out, ref_attn = _reference(x, params, n_head=N_HEAD, d_k=D_K, d_v=D_V)
    np.testing.assert_allclose(np.asarray(attn), np.asarray(ref_attn),
                               rtol=1e-5, atol=1e-5)
    np.testing.assert_allclose(np.asarray(out), np.asarray(ref_out),
                               rtol=1e-4, atol=1e-4)

    print("KERNEL_OK")
</pallas_src>

<mosaic_0001>
module attributes {stable_mosaic.version = 11 : i64} {
  func.func @_encoder_layer_kernel(%arg0: i32, %arg1: memref<1x8x32xf32, #tpu.memory_space<vmem>>, %arg2: memref<32x96xf32, #tpu.memory_space<vmem>>, %arg3: memref<32x32xf32, #tpu.memory_space<vmem>>, %arg4: memref<32x64xf32, #tpu.memory_space<vmem>>, %arg5: memref<1x64xf32, #tpu.memory_space<vmem>>, %arg6: memref<64x32xf32, #tpu.memory_space<vmem>>, %arg7: memref<1x32xf32, #tpu.memory_space<vmem>>, %arg8: memref<1x32xf32, #tpu.memory_space<vmem>>, %arg9: memref<1x32xf32, #tpu.memory_space<vmem>>, %arg10: memref<1x32xf32, #tpu.memory_space<vmem>>, %arg11: memref<1x32xf32, #tpu.memory_space<vmem>>, %arg12: memref<1x8x32xf32, #tpu.memory_space<vmem>>, %arg13: memref<1x2x8x8xf32, #tpu.memory_space<vmem>>) attributes {dimension_semantics = [#tpu.dimension_semantics<parallel>], iteration_bounds = array<i64: 2>, scalar_prefetch = 0 : i64, scratch_operands = 0 : i64, tpu.core_type = #tpu.core_type<tc>, window_params = [{transform_indices = @transform_0, window_bounds = array<i64: 1, 8, 32>}, {pipeline_mode = #tpu.pipeline_mode<synchronous>, transform_indices = @transform_1, window_bounds = array<i64: 32, 96>}, {pipeline_mode = #tpu.pipeline_mode<synchronous>, transform_indices = @transform_2, window_bounds = array<i64: 32, 32>}, {pipeline_mode = #tpu.pipeline_mode<synchronous>, transform_indices = @transform_3, window_bounds = array<i64: 32, 64>}, {pipeline_mode = #tpu.pipeline_mode<synchronous>, transform_indices = @transform_4, window_bounds = array<i64: 1, 64>}, {pipeline_mode = #tpu.pipeline_mode<synchronous>, transform_indices = @transform_5, window_bounds = array<i64: 64, 32>}, {pipeline_mode = #tpu.pipeline_mode<synchronous>, transform_indices = @transform_6, window_bounds = array<i64: 1, 32>}, {pipeline_mode = #tpu.pipeline_mode<synchronous>, transform_indices = @transform_7, window_bounds = array<i64: 1, 32>}, {pipeline_mode = #tpu.pipeline_mode<synchronous>, transform_indices = @transform_8, window_bounds = array<i64: 1, 32>}, {pipeline_mode = #tpu.pipeline_mode<synchronous>, transform_indices = @transform_9, window_bounds = array<i64: 1, 32>}, {pipeline_mode = #tpu.pipeline_mode<synchronous>, transform_indices = @transform_10, window_bounds = array<i64: 1, 32>}, {transform_indices = @transform_11, window_bounds = array<i64: 1, 8, 32>}, {transform_indices = @transform_12, window_bounds = array<i64: 1, 2, 8, 8>}]} {
    %c0 = arith.constant 0 : index
    %c0_0 = arith.constant 0 : index
    %c0_1 = arith.constant 0 : index
    %0 = vector.load %arg1[%c0, %c0_0, %c0_1] : memref<1x8x32xf32, #tpu.memory_space<vmem>>, vector<1x8x32xf32>
    %1 = vector.shape_cast %0 : vector<1x8x32xf32> to vector<8x32xf32>
    %c0_2 = arith.constant 0 : index
    %c0_3 = arith.constant 0 : index
    %2 = vector.load %arg2[%c0_2, %c0_3] : memref<32x96xf32, #tpu.memory_space<vmem>>, vector<32x96xf32>
    %cst = arith.constant dense<0.000000e+00> : vector<8x96xf32>
    %3 = tpu.matmul %1, %2, %cst {dimension_numbers = #tpu.dot_dimension_numbers<[1], [0], [0], [1], [0, 0, 1, 1], [], []>} : vector<8x32xf32>, vector<32x96xf32>, vector<8x96xf32> -> vector<8x96xf32>
    %4 = vector.extract_strided_slice %3 {offsets = [0, 0], sizes = [8, 32], strides = [1, 1]} : vector<8x96xf32> to vector<8x32xf32>
    %5 = vector.extract_strided_slice %3 {offsets = [0, 32], sizes = [8, 32], strides = [1, 1]} : vector<8x96xf32> to vector<8x32xf32>
    %6 = vector.extract_strided_slice %3 {offsets = [0, 64], sizes = [8, 32], strides = [1, 1]} : vector<8x96xf32> to vector<8x32xf32>
    %7 = vector.extract_strided_slice %4 {offsets = [0, 0], sizes = [8, 16], strides = [1, 1]} : vector<8x32xf32> to vector<8x16xf32>
    %8 = vector.extract_strided_slice %4 {offsets = [0, 16], sizes = [8, 16], strides = [1, 1]} : vector<8x32xf32> to vector<8x16xf32>
    %9 = vector.shape_cast %7 : vector<8x16xf32> to vector<1x8x16xf32>
    %10 = vector.shape_cast %8 : vector<8x16xf32> to vector<1x8x16xf32>
    %11 = tpu.concatenate %9, %10 in 0 : vector<1x8x16xf32>, vector<1x8x16xf32> -> vector<2x8x16xf32>
    %12 = vector.extract_strided_slice %5 {offsets = [0, 0], sizes = [8, 16], strides = [1, 1]} : vector<8x32xf32> to vector<8x16xf32>
    %13 = vector.extract_strided_slice %5 {offsets = [0, 16], sizes = [8, 16], strides = [1, 1]} : vector<8x32xf32> to vector<8x16xf32>
    %14 = vector.shape_cast %12 : vector<8x16xf32> to vector<1x8x16xf32>
    %15 = vector.shape_cast %13 : vector<8x16xf32> to vector<1x8x16xf32>
    %16 = tpu.concatenate %14, %15 in 0 : vector<1x8x16xf32>, vector<1x8x16xf32> -> vector<2x8x16xf32>
    %cst_4 = arith.constant dense<0.000000e+00> : vector<2x8x8xf32>
    %17 = tpu.matmul %11, %16, %cst_4 {dimension_numbers = #tpu.dot_dimension_numbers<[2], [2], [1], [1], [0, 0, 0, 1, 1, 1], [0], [0]>} : vector<2x8x16xf32>, vector<2x8x16xf32>, vector<2x8x8xf32> -> vector<2x8x8xf32>
    %cst_5 = arith.constant 2.500000e-01 : f32
    %18 = vector.broadcast %cst_5 : f32 to vector<2x8x8xf32>
    %19 = arith.mulf %17, %18 : vector<2x8x8xf32>
    %cst_6 = arith.constant dense<0xFF800000> : vector<2x8xf32>
    %20 = vector.multi_reduction <maximumf>, %19, %cst_6 [2] : vector<2x8x8xf32> to vector<2x8xf32>
    %21 = vector.shape_cast %20 : vector<2x8xf32> to vector<2x8x1xf32>
    %22 = vector.broadcast %21 : vector<2x8x1xf32> to vector<2x8x8xf32>
    %23 = arith.subf %19, %22 : vector<2x8x8xf32>
    %24 = math.exp %23 : vector<2x8x8xf32>
    %cst_7 = arith.constant dense<0.000000e+00> : vector<2x8xf32>
    %25 = vector.multi_reduction <add>, %24, %cst_7 [2] : vector<2x8x8xf32> to vector<2x8xf32>
    %26 = vector.shape_cast %25 : vector<2x8xf32> to vector<2x8x1xf32>
    %27 = tpu.reciprocal %26 : vector<2x8x1xf32> -> vector<2x8x1xf32>
    %28 = vector.broadcast %27 : vector<2x8x1xf32> to vector<2x8x8xf32>
    %29 = arith.mulf %24, %28 : vector<2x8x8xf32>
    %c0_8 = arith.constant 0 : index
    %c0_9 = arith.constant 0 : index
    %c0_10 = arith.constant 0 : index
    %c0_11 = arith.constant 0 : index
    %30 = vector.load %arg13[%c0_8, %c0_9, %c0_10, %c0_11] : memref<1x2x8x8xf32, #tpu.memory_space<vmem>>, vector<1x2x8x8xf32>
    %31 = vector.shape_cast %30 : vector<1x2x8x8xf32> to vector<2x8x8xf32>
    %32 = vector.shape_cast %29 : vector<2x8x8xf32> to vector<1x2x8x8xf32>
    tpu.vector_store %arg13[%c0_8, %c0_9, %c0_10, %c0_11], %32 {strides = array<i32>} : memref<1x2x8x8xf32, #tpu.memory_space<vmem>>, vector<1x2x8x8xf32>,
    %cst_12 = arith.constant dense<0.000000e+00> : vector<2x8xf32>
    %33 = vector.multi_reduction <add>, %29, %cst_12 [2] : vector<2x8x8xf32> to vector<2x8xf32>
    %34 = vector.shape_cast %33 : vector<2x8xf32> to vector<2x8x1xf32>
    %cst_13 = arith.constant dense<0.000000e+00> : vector<32xf32>
    %35 = vector.multi_reduction <add>, %6, %cst_13 [0] : vector<8x32xf32> to vector<32xf32>
    %36 = vector.shape_cast %35 : vector<32xf32> to vector<1x32xf32>
    %37 = vector.extract_strided_slice %34 {offsets = [0, 0, 0], sizes = [1, 8, 1], strides = [1, 1, 1]} : vector<2x8x1xf32> to vector<1x8x1xf32>
    %38 = vector.shape_cast %37 : vector<1x8x1xf32> to vector<8x1xf32>
    %39 = vector.extract_strided_slice %36 {offsets = [0, 0], sizes = [1, 16], strides = [1, 1]} : vector<1x32xf32> to vector<1x16xf32>
    %40 = vector.broadcast %38 : vector<8x1xf32> to vector<8x16xf32>
    %41 = vector.broadcast %39 : vector<1x16xf32> to vector<8x16xf32>
    %42 = arith.mulf %40, %41 : vector<8x16xf32>
    %43 = vector.extract_strided_slice %34 {offsets = [1, 0, 0], sizes = [1, 8, 1], strides = [1, 1, 1]} : vector<2x8x1xf32> to vector<1x8x1xf32>
    %44 = vector.shape_cast %43 : vector<1x8x1xf32> to vector<8x1xf32>
    %45 = vector.extract_strided_slice %36 {offsets = [0, 16], sizes = [1, 16], strides = [1, 1]} : vector<1x32xf32> to vector<1x16xf32>
    %46 = vector.broadcast %44 : vector<8x1xf32> to vector<8x16xf32>
    %47 = vector.broadcast %45 : vector<1x16xf32> to vector<8x16xf32>
    %48 = arith.mulf %46, %47 : vector<8x16xf32>
    %49 = tpu.concatenate %42, %48 in 0 : vector<8x16xf32>, vector<8x16xf32> -> vector<16x16xf32>
    %50 = tpu.iota {dimensions = array<i32: 0>} : vector<8x16xi32>
    %51 = tpu.iota {dimensions = array<i32: 1>} : vector<8x16xi32>
    %c2_i32 = arith.constant 2 : i32
    %52 = vector.broadcast %c2_i32 : i32 to vector<8x16xi32>
    %53 = arith.muli %50, %52 : vector<8x16xi32>
    %c0_i32 = arith.constant 0 : i32
    %54 = vector.broadcast %c0_i32 : i32 to vector<8x16xi32>
    %55 = arith.addi %53, %54 : vector<8x16xi32>
    %56 = arith.cmpi eq, %51, %55 : vector<8x16xi32>
    %57 = arith.extui %56 : vector<8x16xi1> to vector<8x16xi32>
    %58 = arith.sitofp %57 : vector<8x16xi32> to vector<8x16xf32>
    %cst_14 = arith.constant dense<0.000000e+00> : vector<8x16xf32>
    %59 = tpu.matmul %58, %49, %cst_14 {dimension_numbers = #tpu.dot_dimension_numbers<[1], [0], [0], [1], [0, 0, 1, 1], [], []>} : vector<8x16xf32>, vector<16x16xf32>, vector<8x16xf32> -> vector<8x16xf32>
    %c2_i32_15 = arith.constant 2 : i32
    %60 = vector.broadcast %c2_i32_15 : i32 to vector<8x16xi32>
    %61 = arith.muli %50, %60 : vector<8x16xi32>
    %c1_i32 = arith.constant 1 : i32
    %62 = vector.broadcast %c1_i32 : i32 to vector<8x16xi32>
    %63 = arith.addi %61, %62 : vector<8x16xi32>
    %64 = arith.cmpi eq, %51, %63 : vector<8x16xi32>
    %65 = arith.extui %64 : vector<8x16xi1> to vector<8x16xi32>
    %66 = arith.sitofp %65 : vector<8x16xi32> to vector<8x16xf32>
    %cst_16 = arith.constant dense<0.000000e+00> : vector<8x16xf32>
    %67 = tpu.matmul %66, %49, %cst_16 {dimension_numbers = #tpu.dot_dimension_numbers<[1], [0], [0], [1], [0, 0, 1, 1], [], []>} : vector<8x16xf32>, vector<16x16xf32>, vector<8x16xf32> -> vector<8x16xf32>
    %68 = tpu.concatenate %59, %67 in 1 : vector<8x16xf32>, vector<8x16xf32> -> vector<8x32xf32>
    %c0_17 = arith.constant 0 : index
    %c0_18 = arith.constant 0 : index
    %69 = vector.load %arg3[%c0_17, %c0_18] : memref<32x32xf32, #tpu.memory_space<vmem>>, vector<32x32xf32>
    %cst_19 = arith.constant dense<0.000000e+00> : vector<8x32xf32>
    %70 = tpu.matmul %68, %69, %cst_19 {dimension_numbers = #tpu.dot_dimension_numbers<[1], [0], [0], [1], [0, 0, 1, 1], [], []>} : vector<8x32xf32>, vector<32x32xf32>, vector<8x32xf32> -> vector<8x32xf32>
    %71 = arith.addf %70, %1 : vector<8x32xf32>
    %c0_20 = arith.constant 0 : index
    %c0_21 = arith.constant 0 : index
    %72 = vector.load %arg8[%c0_20, %c0_21] : memref<1x32xf32, #tpu.memory_space<vmem>>, vector<1x32xf32>
    %c0_22 = arith.constant 0 : index
    %c0_23 = arith.constant 0 : index
    %73 = vector.load %arg9[%c0_22, %c0_23] : memref<1x32xf32, #tpu.memory_space<vmem>>, vector<1x32xf32>
    %cst_24 = arith.constant dense<0.000000e+00> : vector<8xf32>
    %74 = vector.multi_reduction <add>, %71, %cst_24 [1] : vector<8x32xf32> to vector<8xf32>
    %75 = vector.shape_cast %74 : vector<8xf32> to vector<8x1xf32>
    %cst_25 = arith.constant 3.200000e+01 : f32
    %76 = vector.broadcast %cst_25 : f32 to vector<8x1xf32>
    %77 = arith.divf %75, %76 : vector<8x1xf32>
    %78 = vector.broadcast %77 : vector<8x1xf32> to vector<8x32xf32>
    %79 = arith.subf %71, %78 : vector<8x32xf32>
    %80 = arith.mulf %79, %79 : vector<8x32xf32>
    %cst_26 = arith.constant dense<0.000000e+00> : vector<8xf32>
    %81 = vector.multi_reduction <add>, %80, %cst_26 [1] : vector<8x32xf32> to vector<8xf32>
    %82 = vector.shape_cast %81 : vector<8xf32> to vector<8x1xf32>
    %cst_27 = arith.constant 3.200000e+01 : f32
    %83 = vector.broadcast %cst_27 : f32 to vector<8x1xf32>
    %84 = arith.divf %82, %83 : vector<8x1xf32>
    %85 = vector.broadcast %77 : vector<8x1xf32> to vector<8x32xf32>
    %86 = arith.subf %71, %85 : vector<8x32xf32>
    %cst_28 = arith.constant 9.99999997E-7 : f32
    %87 = vector.broadcast %cst_28 : f32 to vector<8x1xf32>
    %88 = arith.addf %84, %87 : vector<8x1xf32>
    %89 = math.rsqrt %88 : vector<8x1xf32>
    %90 = vector.broadcast %89 : vector<8x1xf32> to vector<8x32xf32>
    %91 = arith.mulf %86, %90 : vector<8x32xf32>
    %92 = vector.broadcast %72 : vector<1x32xf32> to vector<8x32xf32>
    %93 = arith.mulf %91, %92 : vector<8x32xf32>
    %94 = vector.broadcast %73 : vector<1x32xf32> to vector<8x32xf32>
    %95 = arith.addf %93, %94 : vector<8x32xf32>
    %c0_29 = arith.constant 0 : index
    %c0_30 = arith.constant 0 : index
    %96 = vector.load %arg4[%c0_29, %c0_30] : memref<32x64xf32, #tpu.memory_space<vmem>>, vector<32x64xf32>
    %cst_31 = arith.constant dense<0.000000e+00> : vector<8x64xf32>
    %97 = tpu.matmul %95, %96, %cst_31 {dimension_numbers = #tpu.dot_dimension_numbers<[1], [0], [0], [1], [0, 0, 1, 1], [], []>} : vector<8x32xf32>, vector<32x64xf32>, vector<8x64xf32> -> vector<8x64xf32>
    %c0_32 = arith.constant 0 : index
    %c0_33 = arith.constant 0 : index
    %98 = vector.load %arg5[%c0_32, %c0_33] : memref<1x64xf32, #tpu.memory_space<vmem>>, vector<1x64xf32>
    %99 = vector.broadcast %98 : vector<1x64xf32> to vector<8x64xf32>
    %100 = arith.addf %97, %99 : vector<8x64xf32>
    %cst_34 = arith.constant 0.000000e+00 : f32
    %101 = vector.broadcast %cst_34 : f32 to vector<8x64xf32>
    %102 = arith.maximumf %100, %101 : vector<8x64xf32>
    %c0_35 = arith.constant 0 : index
    %c0_36 = arith.constant 0 : index
    %103 = vector.load %arg6[%c0_35, %c0_36] : memref<64x32xf32, #tpu.memory_space<vmem>>, vector<64x32xf32>
    %cst_37 = arith.constant dense<0.000000e+00> : vector<8x32xf32>
    %104 = tpu.matmul %102, %103, %cst_37 {dimension_numbers = #tpu.dot_dimension_numbers<[1], [0], [0], [1], [0, 0, 1, 1], [], []>} : vector<8x64xf32>, vector<64x32xf32>, vector<8x32xf32> -> vector<8x32xf32>
    %c0_38 = arith.constant 0 : index
    %c0_39 = arith.constant 0 : index
    %105 = vector.load %arg7[%c0_38, %c0_39] : memref<1x32xf32, #tpu.memory_space<vmem>>, vector<1x32xf32>
    %106 = vector.broadcast %105 : vector<1x32xf32> to vector<8x32xf32>
    %107 = arith.addf %104, %106 : vector<8x32xf32>
    %108 = arith.addf %107, %95 : vector<8x32xf32>
    %c0_40 = arith.constant 0 : index
    %c0_41 = arith.constant 0 : index
    %109 = vector.load %arg10[%c0_40, %c0_41] : memref<1x32xf32, #tpu.memory_space<vmem>>, vector<1x32xf32>
    %c0_42 = arith.constant 0 : index
    %c0_43 = arith.constant 0 : index
    %110 = vector.load %arg11[%c0_42, %c0_43] : memref<1x32xf32, #tpu.memory_space<vmem>>, vector<1x32xf32>
    %cst_44 = arith.constant dense<0.000000e+00> : vector<8xf32>
    %111 = vector.multi_reduction <add>, %108, %cst_44 [1] : vector<8x32xf32> to vector<8xf32>
    %112 = vector.shape_cast %111 : vector<8xf32> to vector<8x1xf32>
    %cst_45 = arith.constant 3.200000e+01 : f32
    %113 = vector.broadcast %cst_45 : f32 to vector<8x1xf32>
    %114 = arith.divf %112, %113 : vector<8x1xf32>
    %115 = vector.broadcast %114 : vector<8x1xf32> to vector<8x32xf32>
    %116 = arith.subf %108, %115 : vector<8x32xf32>
    %117 = arith.mulf %116, %116 : vector<8x32xf32>
    %cst_46 = arith.constant dense<0.000000e+00> : vector<8xf32>
    %118 = vector.multi_reduction <add>, %117, %cst_46 [1] : vector<8x32xf32> to vector<8xf32>
    %119 = vector.shape_cast %118 : vector<8xf32> to vector<8x1xf32>
    %cst_47 = arith.constant 3.200000e+01 : f32
    %120 = vector.broadcast %cst_47 : f32 to vector<8x1xf32>
    %121 = arith.divf %119, %120 : vector<8x1xf32>
    %122 = vector.broadcast %114 : vector<8x1xf32> to vector<8x32xf32>
    %123 = arith.subf %108, %122 : vector<8x32xf32>
    %cst_48 = arith.constant 9.99999997E-7 : f32
    %124 = vector.broadcast %cst_48 : f32 to vector<8x1xf32>
    %125 = arith.addf %121, %124 : vector<8x1xf32>
    %126 = math.rsqrt %125 : vector<8x1xf32>
    %127 = vector.broadcast %126 : vector<8x1xf32> to vector<8x32xf32>
    %128 = arith.mulf %123, %127 : vector<8x32xf32>
    %129 = vector.broadcast %109 : vector<1x32xf32> to vector<8x32xf32>
    %130 = arith.mulf %128, %129 : vector<8x32xf32>
    %131 = vector.broadcast %110 : vector<1x32xf32> to vector<8x32xf32>
    %132 = arith.addf %130, %131 : vector<8x32xf32>
    %c0_49 = arith.constant 0 : index
    %c0_50 = arith.constant 0 : index
    %c0_51 = arith.constant 0 : index
    %133 = vector.load %arg12[%c0_49, %c0_50, %c0_51] : memref<1x8x32xf32, #tpu.memory_space<vmem>>, vector<1x8x32xf32>
    %134 = vector.shape_cast %133 : vector<1x8x32xf32> to vector<8x32xf32>
    %135 = vector.shape_cast %132 : vector<8x32xf32> to vector<1x8x32xf32>
    tpu.vector_store %arg12[%c0_49, %c0_50, %c0_51], %135 {strides = array<i32>} : memref<1x8x32xf32, #tpu.memory_space<vmem>>, vector<1x8x32xf32>,
    return
  }
  func.func @transform_0(%arg0: i32) -> (i32, i32, i32) {
    %c0_i32 = arith.constant 0 : i32
    %c0_i32_0 = arith.constant 0 : i32
    %c0_i32_1 = arith.constant 0 : i32
    return %arg0, %c0_i32, %c0_i32_0 : i32, i32, i32
  }
  func.func @transform_1(%arg0: i32) -> (i32, i32) {
    %c0_i32 = arith.constant 0 : i32
    %c0_i32_0 = arith.constant 0 : i32
    %c0_i32_1 = arith.constant 0 : i32
    return %c0_i32, %c0_i32_0 : i32, i32
  }
  func.func @transform_2(%arg0: i32) -> (i32, i32) {
    %c0_i32 = arith.constant 0 : i32
    %c0_i32_0 = arith.constant 0 : i32
    %c0_i32_1 = arith.constant 0 : i32
    return %c0_i32, %c0_i32_0 : i32, i32
  }
  func.func @transform_3(%arg0: i32) -> (i32, i32) {
    %c0_i32 = arith.constant 0 : i32
    %c0_i32_0 = arith.constant 0 : i32
    %c0_i32_1 = arith.constant 0 : i32
    return %c0_i32, %c0_i32_0 : i32, i32
  }
  func.func @transform_4(%arg0: i32) -> (i32, i32) {
    %c0_i32 = arith.constant 0 : i32
    %c0_i32_0 = arith.constant 0 : i32
    %c0_i32_1 = arith.constant 0 : i32
    return %c0_i32, %c0_i32_0 : i32, i32
  }
  func.func @transform_5(%arg0: i32) -> (i32, i32) {
    %c0_i32 = arith.constant 0 : i32
    %c0_i32_0 = arith.constant 0 : i32
    %c0_i32_1 = arith.constant 0 : i32
    return %c0_i32, %c0_i32_0 : i32, i32
  }
  func.func @transform_6(%arg0: i32) -> (i32, i32) {
    %c0_i32 = arith.constant 0 : i32
    %c0_i32_0 = arith.constant 0 : i32
    %c0_i32_1 = arith.constant 0 : i32
    return %c0_i32, %c0_i32_0 : i32, i32
  }
  func.func @transform_7(%arg0: i32) -> (i32, i32) {
    %c0_i32 = arith.constant 0 : i32
    %c0_i32_0 = arith.constant 0 : i32
    %c0_i32_1 = arith.constant 0 : i32
    return %c0_i32, %c0_i32_0 : i32, i32
  }
  func.func @transform_8(%arg0: i32) -> (i32, i32) {
    %c0_i32 = arith.constant 0 : i32
    %c0_i32_0 = arith.constant 0 : i32
    %c0_i32_1 = arith.constant 0 : i32
    return %c0_i32, %c0_i32_0 : i32, i32
  }
  func.func @transform_9(%arg0: i32) -> (i32, i32) {
    %c0_i32 = arith.constant 0 : i32
    %c0_i32_0 = arith.constant 0 : i32
    %c0_i32_1 = arith.constant 0 : i32
    return %c0_i32, %c0_i32_0 : i32, i32
  }
  func.func @transform_10(%arg0: i32) -> (i32, i32) {
    %c0_i32 = arith.constant 0 : i32
    %c0_i32_0 = arith.constant 0 : i32
    %c0_i32_1 = arith.constant 0 : i32
    return %c0_i32, %c0_i32_0 : i32, i32
  }
  func.func @transform_11(%arg0: i32) -> (i32, i32, i32) {
    %c0_i32 = arith.constant 0 : i32
    %c0_i32_0 = arith.constant 0 : i32
    %c0_i32_1 = arith.constant 0 : i32
    return %arg0, %c0_i32, %c0_i32_0 : i32, i32, i32
  }
  func.func @transform_12(%arg0: i32) -> (i32, i32, i32, i32) {
    %c0_i32 = arith.constant 0 : i32
    %c0_i32_0 = arith.constant 0 : i32
    %c0_i32_1 = arith.constant 0 : i32
    %c0_i32_2 = arith.constant 0 : i32
    return %arg0, %c0_i32, %c0_i32_0, %c0_i32_1 : i32, i32, i32, i32
  }
}

</mosaic_0001>

<llo_original>
// kernel: tpu_custom_call.1
$region0: #{tpu_custom_call.1}
  #allocation0 [shape = 'u32[]', space=smem, size = 0x4, offset = 0x4, fixed_abs, tag = 'smem constant byte address 0x4 - core index']
  #allocation1 [shape = 'u32[144,128]{1,0:T(1,128)}', space=vmem, size = 0x12000, scoped, tag = 'internal scratch']
  %s0 = inlined_call_operand.hbm [shape: f32[2,8,32], index: 0, kind: input, shape index: {}]
  %s1 = inlined_call_operand.vmem [shape: f32[32,96], index: 1, kind: input, shape index: {}]
  %s2 = inlined_call_operand.vmem [shape: f32[32,32], index: 2, kind: input, shape index: {}]
  %s3 = inlined_call_operand.vmem [shape: f32[32,64], index: 3, kind: input, shape index: {}]
  %s4 = inlined_call_operand.vmem [shape: f32[1,64], index: 4, kind: input, shape index: {}]
  %s5 = inlined_call_operand.vmem [shape: f32[64,32], index: 5, kind: input, shape index: {}]
  %s6 = inlined_call_operand.vmem [shape: f32[1,32], index: 6, kind: input, shape index: {}]
  %s7 = inlined_call_operand.vmem [shape: f32[1,32], index: 7, kind: input, shape index: {}]
  %s8 = inlined_call_operand.vmem [shape: f32[1,32], index: 8, kind: input, shape index: {}]
  %s9 = inlined_call_operand.vmem [shape: f32[1,32], index: 9, kind: input, shape index: {}]
  %s10 = inlined_call_operand.vmem [shape: f32[1,32], index: 10, kind: input, shape index: {}]
  %s11 = inlined_call_operand.hbm [shape: f32[2,8,32], index: 11, kind: output, shape index: {0}]
  %s12 = inlined_call_operand.hbm [shape: f32[2,2,8,8], index: 12, kind: output, shape index: {1}]
  %13 = xla_tuple %s11, %s12
  %s14 = sld [smem:[#allocation0]]
  $region89: #{tpu_custom_call.1} parent=0
    _
  %s16 = ssub.s32 1, %s14
  %s17 = scalar_select 0, %s16, %s14
  $region1: #{tpu_custom_call.1} parent=0
    #allocation2 [shape = 'u8[8192]{0}', space=vmem, size = 0x2000, scoped, tag = 'input window, operand 0']
    #allocation3 [shape = 's32[2]{0}', space=sflag, size = 0x8, scoped, tag = 'scoped memory for tpu_custom_call.1']
    #allocation4 [shape = 's32[2]{0}', space=sflag, size = 0x8, scoped, tag = 'scoped memory for tpu_custom_call.1']
    #allocation5 [shape = 'u8[8192]{0}', space=vmem, size = 0x2000, scoped, tag = 'output window, operand 0']
    #allocation6 [shape = 'u8[16384]{0}', space=vmem, size = 0x4000, scoped, tag = 'output window, operand 1']
    #allocation7 [shape = 's32[2]{0}', space=sflag, size = 0x8, scoped, tag = 'scoped memory for tpu_custom_call.1']
    %18 = vsyncpa [#allocation3], 0
    %s19 = scalar_lea.sflag [#allocation3], 1
    %20 = vsyncpa %s19, 0
    %21 = vsyncpa [#allocation4], 0
    %s22 = scalar_lea.sflag [#allocation4], 1
    %23 = vsyncpa %s22, 0
    %24 = vsyncpa [#allocation7], 0
    %s25 = scalar_lea.sflag [#allocation7], 1
    %26 = vsyncpa %s25, 0
    loop: start=0, step=1, limit=4
    $region2: #{tpu_custom_call.1} parent=1 // loop_pre_header
      _
    $region3: #{tpu_custom_call.1} parent=1 // loop_header
      %s28 = sphi 0, %s32
      %p29 = scmp.ge.s32.totalorder %s28, 4
      %s38 = sphi 0, %s40
      %s41 = sphi 0, %s38
      %s42 = sphi 0, %s41
      %s58 = sphi 0, %s42
      %s62 = sphi 0, %s62
      %s64 = sphi 0, %s62
      %s65 = sphi 0, %s64
      %s79 = sphi 0, %s65
      %s83 = sphi 0, %s83
      %s85 = sphi 0, %s83
      %s86 = sphi 0, %s85
      %s100 = sphi 0, %s86
      %s104 = sphi 0, %s104
      %s106 = sphi 0, %s104
      %s107 = sphi 0, %s106
      %s121 = sphi 0, %s107
      %s125 = sphi 0, %s125
      %s127 = sphi 0, %s125
      %s128 = sphi 0, %s127
      %s142 = sphi 0, %s128
      %s146 = sphi 0, %s146
      %s148 = sphi 0, %s146
      %s149 = sphi 0, %s148
      %s163 = sphi 0, %s149
      %s167 = sphi 0, %s167
      %s169 = sphi 0, %s167
      %s170 = sphi 0, %s169
      %s184 = sphi 0, %s170
      %s188 = sphi 0, %s188
      %s190 = sphi 0, %s188
      %s191 = sphi 0, %s190
      %s205 = sphi 0, %s191
      %s209 = sphi 0, %s209
      %s211 = sphi 0, %s209
      %s212 = sphi 0, %s211
      %s226 = sphi 0, %s212
      %s230 = sphi 0, %s230
      %s232 = sphi 0, %s230
      %s233 = sphi 0, %s232
      %s247 = sphi 0, %s233
      %s251 = sphi 0, %s251
      %s253 = sphi 0, %s251
      %s254 = sphi 0, %s253
      %s268 = sphi 0, %s254
      %s274 = sphi 0, %s276
      %s277 = sphi 0, %s274
      %s278 = sphi 0, %s277
      %s294 = sphi 0, %s278
      %s300 = sphi 0, %s302
      %s303 = sphi 0, %s300
      %s304 = sphi 0, %s303
      %s320 = sphi 0, %s304
    $region4: #{tpu_custom_call.1} parent=1 // loop_header_branch
      %31 = sbr.rel (%p29) target = $region8
    $region5: #{tpu_custom_call.1} parent=1 // loop_body
      %s33 = ssub.s32 %s28, 1
      %s34 = ssub.s32 %s28, 2
      %s35 = sadd.s32 %s28, 1
      %s36 = ssub.s32 %s28, %s35
      %p37 = scmp.eq.s32.totalorder %s36, 0
      %s39 = sadd.s32 %s38, 1
      %s40 = scalar_select %p37, %s38, %s39
      %p43 = pneg %p37
      %p44 = scmp.eq.s32.totalorder %s28, 1
      %p45 = por %p43, %p44
      %p46 = scmp.ne.s32.totalorder %s38, %s41
      %p47 = scmp.eq.s32.totalorder %s28, 0
      %p48 = por %p46, %p47
      %p49 = scmp.ne.s32.totalorder %s38, %s41
      %p50 = scmp.eq.s32.totalorder %s33, 1
      %p51 = por %p49, %p50
      %p52 = scmp.ne.s32.totalorder %s41, %s42
      %p53 = scmp.eq.s32.totalorder %s33, 0
      %p54 = por %p52, %p53
      %p55 = scmp.ne.s32.totalorder %s41, %s42
      %p56 = scmp.eq.s32.totalorder %s34, 1
      %p57 = por %p55, %p56
      %p59 = scmp.ne.s32.totalorder %s42, %s58
      %p60 = scmp.eq.s32.totalorder %s34, 0
      %p61 = por %p59, %p60
      %s63 = sadd.s32 %s62, 1
      %p66 = scmp.eq.s32.totalorder %s28, 1
      %p67 = scmp.ne.s32.totalorder %s62, %s64
      %p68 = scmp.eq.s32.totalorder %s28, 0
      %p69 = por %p67, %p68
      %p70 = scmp.ne.s32.totalorder %s62, %s64
      %p71 = scmp.eq.s32.totalorder %s33, 1
      %p72 = por %p70, %p71
      %p73 = scmp.ne.s32.totalorder %s64, %s65
      %p74 = scmp.eq.s32.totalorder %s33, 0
      %p75 = por %p73, %p74
      %p76 = scmp.ne.s32.totalorder %s64, %s65
      %p77 = scmp.eq.s32.totalorder %s34, 1
      %p78 = por %p76, %p77
      %p80 = scmp.ne.s32.totalorder %s65, %s79
      %p81 = scmp.eq.s32.totalorder %s34, 0
      %p82 = por %p80, %p81
      %s84 = sadd.s32 %s83, 1
      %p87 = scmp.eq.s32.totalorder %s28, 1
      %p88 = scmp.ne.s32.totalorder %s83, %s85
      %p89 = scmp.eq.s32.totalorder %s28, 0
      %p90 = por %p88, %p89
      %p91 = scmp.ne.s32.totalorder %s83, %s85
      %p92 = scmp.eq.s32.totalorder %s33, 1
      %p93 = por %p91, %p92
      %p94 = scmp.ne.s32.totalorder %s85, %s86
      %p95 = scmp.eq.s32.totalorder %s33, 0
      %p96 = por %p94, %p95
      %p97 = scmp.ne.s32.totalorder %s85, %s86
      %p98 = scmp.eq.s32.totalorder %s34, 1
      %p99 = por %p97, %p98
      %p101 = scmp.ne.s32.totalorder %s86, %s100
      %p102 = scmp.eq.s32.totalorder %s34, 0
      %p103 = por %p101, %p102
      %s105 = sadd.s32 %s104, 1
      %p108 = scmp.eq.s32.totalorder %s28, 1
      %p109 = scmp.ne.s32.totalorder %s104, %s106
      %p110 = scmp.eq.s32.totalorder %s28, 0
      %p111 = por %p109, %p110
      %p112 = scmp.ne.s32.totalorder %s104, %s106
      %p113 = scmp.eq.s32.totalorder %s33, 1
      %p114 = por %p112, %p113
      %p115 = scmp.ne.s32.totalorder %s106, %s107
      %p116 = scmp.eq.s32.totalorder %s33, 0
      %p117 = por %p115, %p116
      %p118 = scmp.ne.s32.totalorder %s106, %s107
      %p119 = scmp.eq.s32.totalorder %s34, 1
      %p120 = por %p118, %p119
      %p122 = scmp.ne.s32.totalorder %s107, %s121
      %p123 = scmp.eq.s32.totalorder %s34, 0
      %p124 = por %p122, %p123
      %s126 = sadd.s32 %s125, 1
      %p129 = scmp.eq.s32.totalorder %s28, 1
      %p130 = scmp.ne.s32.totalorder %s125, %s127
      %p131 = scmp.eq.s32.totalorder %s28, 0
      %p132 = por %p130, %p131
      %p133 = scmp.ne.s32.totalorder %s125, %s127
      %p134 = scmp.eq.s32.totalorder %s33, 1
      %p135 = por %p133, %p134
      %p136 = scmp.ne.s32.totalorder %s127, %s128
      %p137 = scmp.eq.s32.totalorder %s33, 0
      %p138 = por %p136, %p137
      %p139 = scmp.ne.s32.totalorder %s127, %s128
      %p140 = scmp.eq.s32.totalorder %s34, 1
      %p141 = por %p139, %p140
      %p143 = scmp.ne.s32.totalorder %s128, %s142
      %p144 = scmp.eq.s32.totalorder %s34, 0
      %p145 = por %p143, %p144
      %s147 = sadd.s32 %s146, 1
      %p150 = scmp.eq.s32.totalorder %s28, 1
      %p151 = scmp.ne.s32.totalorder %s146, %s148
      %p152 = scmp.eq.s32.totalorder %s28, 0
      %p153 = por %p151, %p152
      %p154 = scmp.ne.s32.totalorder %s146, %s148
      %p155 = scmp.eq.s32.totalorder %s33, 1
      %p156 = por %p154, %p155
      %p157 = scmp.ne.s32.totalorder %s148, %s149
      %p158 = scmp.eq.s32.totalorder %s33, 0
      %p159 = por %p157, %p158
      %p160 = scmp.ne.s32.totalorder %s148, %s149
      %p161 = scmp.eq.s32.totalorder %s34, 1
      %p162 = por %p160, %p161
      %p164 = scmp.ne.s32.totalorder %s149, %s163
      %p165 = scmp.eq.s32.totalorder %s34, 0
      %p166 = por %p164, %p165
      %s168 = sadd.s32 %s167, 1
      %p171 = scmp.eq.s32.totalorder %s28, 1
      %p172 = scmp.ne.s32.totalorder %s167, %s169
      %p173 = scmp.eq.s32.totalorder %s28, 0
      %p174 = por %p172, %p173
      %p175 = scmp.ne.s32.totalorder %s167, %s169
      %p176 = scmp.eq.s32.totalorder %s33, 1
      %p177 = por %p175, %p176
      %p178 = scmp.ne.s32.totalorder %s169, %s170
      %p179 = scmp.eq.s32.totalorder %s33, 0
      %p180 = por %p178, %p179
      %p181 = scmp.ne.s32.totalorder %s169, %s170
      %p182 = scmp.eq.s32.totalorder %s34, 1
      %p183 = por %p181, %p182
      %p185 = scmp.ne.s32.totalorder %s170, %s184
      %p186 = scmp.eq.s32.totalorder %s34, 0
      %p187 = por %p185, %p186
      %s189 = sadd.s32 %s188, 1
      %p192 = scmp.eq.s32.totalorder %s28, 1
      %p193 = scmp.ne.s32.totalorder %s188, %s190
      %p194 = scmp.eq.s32.totalorder %s28, 0
      %p195 = por %p193, %p194
      %p196 = scmp.ne.s32.totalorder %s188, %s190
      %p197 = scmp.eq.s32.totalorder %s33, 1
      %p198 = por %p196, %p197
      %p199 = scmp.ne.s32.totalorder %s190, %s191
      %p200 = scmp.eq.s32.totalorder %s33, 0
      %p201 = por %p199, %p200
      %p202 = scmp.ne.s32.totalorder %s190, %s191
      %p203 = scmp.eq.s32.totalorder %s34, 1
      %p204 = por %p202, %p203
      %p206 = scmp.ne.s32.totalorder %s191, %s205
      %p207 = scmp.eq.s32.totalorder %s34, 0
      %p208 = por %p206, %p207
      %s210 = sadd.s32 %s209, 1
      %p213 = scmp.eq.s32.totalorder %s28, 1
      %p214 = scmp.ne.s32.totalorder %s209, %s211
      %p215 = scmp.eq.s32.totalorder %s28, 0
      %p216 = por %p214, %p215
      %p217 = scmp.ne.s32.totalorder %s209, %s211
      %p218 = scmp.eq.s32.totalorder %s33, 1
      %p219 = por %p217, %p218
      %p220 = scmp.ne.s32.totalorder %s211, %s212
      %p221 = scmp.eq.s32.totalorder %s33, 0
      %p222 = por %p220, %p221
      %p223 = scmp.ne.s32.totalorder %s211, %s212
      %p224 = scmp.eq.s32.totalorder %s34, 1
      %p225 = por %p223, %p224
      %p227 = scmp.ne.s32.totalorder %s212, %s226
      %p228 = scmp.eq.s32.totalorder %s34, 0
      %p229 = por %p227, %p228
      %s231 = sadd.s32 %s230, 1
      %p234 = scmp.eq.s32.totalorder %s28, 1
      %p235 = scmp.ne.s32.totalorder %s230, %s232
      %p236 = scmp.eq.s32.totalorder %s28, 0
      %p237 = por %p235, %p236
      %p238 = scmp.ne.s32.totalorder %s230, %s232
      %p239 = scmp.eq.s32.totalorder %s33, 1
      %p240 = por %p238, %p239
      %p241 = scmp.ne.s32.totalorder %s232, %s233
      %p242 = scmp.eq.s32.totalorder %s33, 0
      %p243 = por %p241, %p242
      %p244 = scmp.ne.s32.totalorder %s232, %s233
      %p245 = scmp.eq.s32.totalorder %s34, 1
      %p246 = por %p244, %p245
      %p248 = scmp.ne.s32.totalorder %s233, %s247
      %p249 = scmp.eq.s32.totalorder %s34, 0
      %p250 = por %p248, %p249
      %s252 = sadd.s32 %s251, 1
      %p255 = scmp.eq.s32.totalorder %s28, 1
      %p256 = scmp.ne.s32.totalorder %s251, %s253
      %p257 = scmp.eq.s32.totalorder %s28, 0
      %p258 = por %p256, %p257
      %p259 = scmp.ne.s32.totalorder %s251, %s253
      %p260 = scmp.eq.s32.totalorder %s33, 1
      %p261 = por %p259, %p260
      %p262 = scmp.ne.s32.totalorder %s253, %s254
      %p263 = scmp.eq.s32.totalorder %s33, 0
      %p264 = por %p262, %p263
      %p265 = scmp.ne.s32.totalorder %s253, %s254
      %p266 = scmp.eq.s32.totalorder %s34, 1
      %p267 = por %p265, %p266
      %p269 = scmp.ne.s32.totalorder %s254, %s268
      %p270 = scmp.eq.s32.totalorder %s34, 0
      %p271 = por %p269, %p270
      %s272 = ssub.s32 %s28, %s35
      %p273 = scmp.eq.s32.totalorder %s272, 0
      %s275 = sadd.s32 %s274, 1
      %s276 = scalar_select %p273, %s274, %s275
      %p279 = pneg %p273
      %p280 = scmp.eq.s32.totalorder %s28, 1
      %p281 = por %p279, %p280
      %p282 = scmp.ne.s32.totalorder %s274, %s277
      %p283 = scmp.eq.s32.totalorder %s28, 0
      %p284 = por %p282, %p283
      %p285 = scmp.ne.s32.totalorder %s274, %s277
      %p286 = scmp.eq.s32.totalorder %s33, 1
      %p287 = por %p285, %p286
      %p288 = scmp.ne.s32.totalorder %s277, %s278
      %p289 = scmp.eq.s32.totalorder %s33, 0
      %p290 = por %p288, %p289
      %p291 = scmp.ne.s32.totalorder %s277, %s278
      %p292 = scmp.eq.s32.totalorder %s34, 1
      %p293 = por %p291, %p292
      %p295 = scmp.ne.s32.totalorder %s278, %s294
      %p296 = scmp.eq.s32.totalorder %s34, 0
      %p297 = por %p295, %p296
      %s298 = ssub.s32 %s28, %s35
      %p299 = scmp.eq.s32.totalorder %s298, 0
      %s301 = sadd.s32 %s300, 1
      %s302 = scalar_select %p299, %s300, %s301
      %p305 = pneg %p299
      %p306 = scmp.eq.s32.totalorder %s28, 1
      %p307 = por %p305, %p306
      %p308 = scmp.ne.s32.totalorder %s300, %s303
      %p309 = scmp.eq.s32.totalorder %s28, 0
      %p310 = por %p308, %p309
      %p311 = scmp.ne.s32.totalorder %s300, %s303
      %p312 = scmp.eq.s32.totalorder %s33, 1
      %p313 = por %p311, %p312
      %p314 = scmp.ne.s32.totalorder %s303, %s304
      %p315 = scmp.eq.s32.totalorder %s33, 0
      %p316 = por %p314, %p315
      %p317 = scmp.ne.s32.totalorder %s303, %s304
      %p318 = scmp.eq.s32.totalorder %s34, 1
      %p319 = por %p317, %p318
      %p321 = scmp.ne.s32.totalorder %s304, %s320
      %p322 = scmp.eq.s32.totalorder %s34, 0
      %p323 = por %p321, %p322
      %p324 = scmp.le.s32.totalorder 1, %s28
      %p325 = scmp.lt.s32.totalorder %s28, 3
      %p326 = pnand %p324, %p325
      %p327 = pneg %p326
      // Predicated region
      $region9: #{tpu_custom_call.1} parent=5 // pred_check
        _
      $region10: #{tpu_custom_call.1} parent=5 // pred_check_branch
        %329 = sbr.rel (%p326) target = $region12
      $region11: #{tpu_custom_call.1} parent=5 // pred_region
        %s330 = ssub.s32 %s28, 1
        // Predicated region
        $region13: #{tpu_custom_call.1} parent=11 // pred_check
          %p331 = pneg %p75
        $region14: #{tpu_custom_call.1} parent=11 // pred_check_branch
          %333 = sbr.rel (%p331) target = $region16
        $region15: #{tpu_custom_call.1} parent=11 // pred_region
          _
        $region16: #{tpu_custom_call.1} parent=11 // pred_fallthru
          _
        // Predicated region
        $region17: #{tpu_custom_call.1} parent=11 // pred_check
          %p334 = pneg %p96
        $region18: #{tpu_custom_call.1} parent=11 // pred_check_branch
          %336 = sbr.rel (%p334) target = $region20
        $region19: #{tpu_custom_call.1} parent=11 // pred_region
          _
        $region20: #{tpu_custom_call.1} parent=11 // pred_fallthru
          _
        // Predicated region
        $region21: #{tpu_custom_call.1} parent=11 // pred_check
          %p337 = pneg %p117
        $region22: #{tpu_custom_call.1} parent=11 // pred_check_branch
          %339 = sbr.rel (%p337) target = $region24
        $region23: #{tpu_custom_call.1} parent=11 // pred_region
          _
        $region24: #{tpu_custom_call.1} parent=11 // pred_fallthru
          _
        // Predicated region
        $region25: #{tpu_custom_call.1} parent=11 // pred_check
          %p340 = pneg %p138
        $region26: #{tpu_custom_call.1} parent=11 // pred_check_branch
          %342 = sbr.rel (%p340) target = $region28
        $region27: #{tpu_custom_call.1} parent=11 // pred_region
          _
        $region28: #{tpu_custom_call.1} parent=11 // pred_fallthru
          _
        // Predicated region
        $region29: #{tpu_custom_call.1} parent=11 // pred_check
          %p343 = pneg %p159
        $region30: #{tpu_custom_call.1} parent=11 // pred_check_branch
          %345 = sbr.rel (%p343) target = $region32
        $region31: #{tpu_custom_call.1} parent=11 // pred_region
          _
        $region32: #{tpu_custom_call.1} parent=11 // pred_fallthru
          _
        // Predicated region
        $region33: #{tpu_custom_call.1} parent=11 // pred_check
          %p346 = pneg %p180
        $region34: #{tpu_custom_call.1} parent=11 // pred_check_branch
          %348 = sbr.rel (%p346) target = $region36
        $region35: #{tpu_custom_call.1} parent=11 // pred_region
          _
        $region36: #{tpu_custom_call.1} parent=11 // pred_fallthru
          _
        // Predicated region
        $region37: #{tpu_custom_call.1} parent=11 // pred_check
          %p349 = pneg %p201
        $region38: #{tpu_custom_call.1} parent=11 // pred_check_branch
          %351 = sbr.rel (%p349) target = $region40
        $region39: #{tpu_custom_call.1} parent=11 // pred_region
          _
        $region40: #{tpu_custom_call.1} parent=11 // pred_fallthru
          _
        // Predicated region
        $region41: #{tpu_custom_call.1} parent=11 // pred_check
          %p352 = pneg %p222
        $region42: #{tpu_custom_call.1} parent=11 // pred_check_branch
          %354 = sbr.rel (%p352) target = $region44
        $region43: #{tpu_custom_call.1} parent=11 // pred_region
          _
        $region44: #{tpu_custom_call.1} parent=11 // pred_fallthru
          _
        // Predicated region
        $region45: #{tpu_custom_call.1} parent=11 // pred_check
          %p355 = pneg %p243
        $region46: #{tpu_custom_call.1} parent=11 // pred_check_branch
          %357 = sbr.rel (%p355) target = $region48
        $region47: #{tpu_custom_call.1} parent=11 // pred_region
          _
        $region48: #{tpu_custom_call.1} parent=11 // pred_fallthru
          _
        // Predicated region
        $region49: #{tpu_custom_call.1} parent=11 // pred_check
          %p358 = pneg %p264
        $region50: #{tpu_custom_call.1} parent=11 // pred_check_branch
          %360 = sbr.rel (%p358) target = $region52
        $region51: #{tpu_custom_call.1} parent=11 // pred_region
          _
        $region52: #{tpu_custom_call.1} parent=11 // pred_fallthru
          _
      $region12: #{tpu_custom_call.1} parent=5 // pred_fallthru
        _
      %p361 = scmp.lt.s32.totalorder %s28, 2
      // Predicated region
      $region53: #{tpu_custom_call.1} parent=5 // pred_check
        %p362 = pneg %p361
      $region54: #{tpu_custom_call.1} parent=5 // pred_check_branch
        %364 = sbr.rel (%p362) target = $region56
      $region55: #{tpu_custom_call.1} parent=5 // pred_region
        // Predicated region
        $region57: #{tpu_custom_call.1} parent=55 // pred_check
          %p365 = pneg %p48
        $region58: #{tpu_custom_call.1} parent=55 // pred_check_branch
          %367 = sbr.rel (%p365) target = $region60
        $region59: #{tpu_custom_call.1} parent=55 // pred_region
          %s368 = sand.u32 %s38, 1
          %s369 = scalar_lea.sflag [#allocation3], %s368
          %s370 = sand.u32 %s38, 1
          %s371 = smul.addr %s370, 8
          %s372 = scalar_lea.vmem [#allocation2], %s371
          %s374 = ssub.s32 128, 128
          %375 = vsyncadd %s369, %s374
          %s376 = smul.addr %s28, 128
          %s377 = scalar_lea.hbm %s0, %s376
          %s379 = sshll.u32 %s372, 4
          %s380 = int_to_ptr.vmem [resolvable:$true] %s379
          %382 = dma.hbm_to_vmem [thread:$0]  %s377, 128, %s380, %s369
        $region60: #{tpu_custom_call.1} parent=55 // pred_fallthru
          _
      $region56: #{tpu_custom_call.1} parent=5 // pred_fallthru
        _
      %p383 = scmp.le.s32.totalorder 1, %s28
      %p384 = scmp.lt.s32.totalorder %s28, 3
      %p385 = pnand %p383, %p384
      %p386 = pneg %p385
      // Predicated region
      $region61: #{tpu_custom_call.1} parent=5 // pred_check
        _
      $region62: #{tpu_custom_call.1} parent=5 // pred_check_branch
        %388 = sbr.rel (%p385) target = $region64
      $region63: #{tpu_custom_call.1} parent=5 // pred_region
        %s389 = ssub.s32 %s28, 1
        %s390 = sand.u32 %s41, 1
        %s391 = scalar_lea.sflag [#allocation3], %s390
        %s392 = sand.u32 %s41, 1
        %s393 = smul.addr %s392, 8
        %s394 = scalar_lea.vmem [#allocation2], %s393
        // Predicated region
        $region65: #{tpu_custom_call.1} parent=63 // pred_check
          %p395 = pneg %p54
        $region66: #{tpu_custom_call.1} parent=63 // pred_check_branch
          %397 = sbr.rel (%p395) target = $region68
        $region67: #{tpu_custom_call.1} parent=63 // pred_region
          %398 = dma.done %s391, 128
        $region68: #{tpu_custom_call.1} parent=63 // pred_fallthru
          _
        %s399 = sand.u32 %s41, 1
        %s400 = scalar_lea.sflag [#allocation3], %s399
        %s401 = sand.u32 %s41, 1
        %s402 = smul.addr %s401, 8
        %s403 = scalar_lea.vmem [#allocation2], %s402
        %p404 = pneg %p54
        %p405 = pneg %p51
        %p406 = pneg %p75
        %p407 = pneg %p72
        %p408 = pneg %p96
        %p409 = pneg %p93
        %p410 = pneg %p117
        %p411 = pneg %p114
        %p412 = pneg %p138
        %p413 = pneg %p135
        %p414 = pneg %p159
        %p415 = pneg %p156
        %p416 = pneg %p180
        %p417 = pneg %p177
        %p418 = pneg %p201
        %p419 = pneg %p198
        %p420 = pneg %p222
        %p421 = pneg %p219
        %p422 = pneg %p243
        %p423 = pneg %p240
        %p424 = pneg %p264
        %p425 = pneg %p261
        %p426 = pneg %p290
        %p427 = pneg %p287
        %s428 = sand.u32 %s277, 1
        %s429 = scalar_lea.sflag [#allocation4], %s428
        %s430 = sand.u32 %s277, 1
        %s431 = smul.addr %s430, 8
        %s432 = scalar_lea.vmem [#allocation5], %s431
        %p433 = pneg %p316
        %p434 = pneg %p313
        %s435 = sand.u32 %s303, 1
        %s436 = scalar_lea.sflag [#allocation7], %s435
        %s437 = sand.u32 %s303, 1
        %s438 = smul.addr %s437, 16
        %s439 = scalar_lea.vmem [#allocation6], %s438
        %v440 = vld [vmem:[%s394] sm:$0xff]
        %v441 = vld [vmem:[%s1] sm:$0xff]
        %v442 = vld [vmem:[%s1 + $0x8] sm:$0xff]
        %v443 = vld [vmem:[%s1 + $0x10] sm:$0xff]
        %v444 = vld [vmem:[%s1 + $0x18] sm:$0xff]
        %vm445 = vcmask 261120
        %v447 = vsel %vm445, %v440, 0
        %449 = vmatprep.subr.mxu0 0.0
        %450 = vmatpush1.msra.mxu0 %v441
        %451 = vmatprep.subr.mxu0 0.0
        %452 = vmatpush1.msra.mxu0 %v442
        %453 = vmatprep.subr.mxu0 0.0
        %454 = vmatpush1.msra.mxu0 %v443
        %455 = vmatprep.subr.mxu0 0.0
        %456 = vmatpush1.msra.mxu0 %v444
        %457 = vmatprep.subr.mxu0 0.0
        %458 = vmatpush1.msra.mxu0 0.0
        %459 = vmatprep.subr.mxu0 0.0
        %460 = vmatpush1.msra.mxu0 0.0
        %461 = vmatprep.subr.mxu0 0.0
        %462 = vmatpush1.msra.mxu0 0.0
        %463 = vmatprep.subr.mxu0 0.0
        %464 = vmatpush1.msra.mxu0 0.0
        %465 = vmatprep.subr.mxu0 0.0
        %466 = vmatpush1.msra.mxu0 0.0
        %467 = vmatprep.subr.mxu0 0.0
        %468 = vmatpush1.msra.mxu0 0.0
        %469 = vmatprep.subr.mxu0 0.0
        %470 = vmatpush1.msra.mxu0 0.0
        %471 = vmatprep.subr.mxu0 0.0
        %472 = vmatpush1.msra.mxu0 0.0
        %473 = vmatprep.subr.mxu0 0.0
        %474 = vmatpush1.msra.mxu0 0.0
        %475 = vmatprep.subr.mxu0 0.0
        %476 = vmatpush1.msra.mxu0 0.0
        %477 = vmatprep.subr.mxu0 0.0
        %478 = vmatpush1.msra.mxu0 0.0
        %479 = vmatprep.subr.mxu0 0.0
        %480 = vmatpush1.msra.mxu0 0.0
        %481 = vmatprep.subr.mxu0 0.0
        %482 = vmatpush1.msra.mxu0 0.0
        %483 = vmatprep.subr.mxu0 0.0
        %484 = vmatpush1.msra.mxu0 0.0
        %485 = vmatprep.subr.mxu0 0.0
        %486 = vmatpush1.msra.mxu0 0.0
        %487 = vmatprep.subr.mxu0 0.0
        %488 = vmatpush1.msra.mxu0 0.0
        %489 = vmatprep.subr.mxu0 0.0
        %490 = vmatpush1.msra.mxu0 0.0
        %491 = vmatprep.subr.mxu0 0.0
        %492 = vmatpush1.msra.mxu0 0.0
        %493 = vmatprep.subr.mxu0 0.0
        %494 = vmatpush1.msra.mxu0 0.0
        %495 = vmatprep.subr.mxu0 0.0
        %496 = vmatpush1.msra.mxu0 0.0
        %497 = vmatprep.subr.mxu0 0.0
        %498 = vmatpush1.msra.mxu0 0.0
        %499 = vmatprep.subr.mxu0 0.0
        %500 = vmatpush1.msra.mxu0 0.0
        %501 = vmatprep.subr.mxu0 0.0
        %502 = vmatpush1.msra.mxu0 0.0
        %503 = vmatprep.subr.mxu0 0.0
        %504 = vmatpush1.msra.mxu0 0.0
        %505 = vmatprep.subr.mxu0 0.0
        %506 = vmatpush1.msra.mxu0 0.0
        %507 = vmatprep.subr.mxu0 0.0
        %508 = vmatpush1.msra.mxu0 0.0
        %509 = vmatprep.subr.mxu0 0.0
        %510 = vmatpush1.msra.mxu0 0.0
        %511 = vmatprep.subr.mxu0 0.0
        %512 = vmatpush1.msra.mxu0 0.0
        %513 = vmatprep.mubr.f32.mxu0 0.0
        %514 = vmatmul.mubr.f32.gmra.mrb[0].mxu0 %v447
        %v515 = vpop.f32.mrb[0].mxu0
        %v516 = vadd.f32 0.0, %v515
        %v517 = vpop.f32.mrb[0].mxu0
        %518 = vdwg.mxu0
        %520 = vrot.lane.b32.xlu0 %v516, 112
        %v521 = vpop.permute.xlu0 %520
        %522 = vrot.lane.b32.xlu0 %v516, 96
        %v523 = vpop.permute.xlu0 %522
        %vm524 = vcmask 130048
        %v525 = vsel %vm524, %v516, 0
        %v527 = vsel %vm524, %v523, 0
        %529 = vmatprep.subr.mxu0 0.0
        %530 = vmatpush1.xpose.msra.mxu0 %v527
        %531 = vmatprep.subr.mxu0 0.0
        %532 = vmatpush1.xpose.msra.mxu0 0.0
        %533 = vmatprep.subr.mxu0 0.0
        %534 = vmatpush1.xpose.msra.mxu0 0.0
        %535 = vmatprep.subr.mxu0 0.0
        %536 = vmatpush1.xpose.msra.mxu0 0.0
        %537 = vmatprep.subr.mxu0 0.0
        %538 = vmatpush1.xpose.msra.mxu0 0.0
        %539 = vmatprep.subr.mxu0 0.0
        %540 = vmatpush1.xpose.msra.mxu0 0.0
        %541 = vmatprep.subr.mxu0 0.0
        %542 = vmatpush1.xpose.msra.mxu0 0.0
        %543 = vmatprep.subr.mxu0 0.0
        %544 = vmatpush1.xpose.msra.mxu0 0.0
        %545 = vmatprep.subr.mxu0 0.0
        %546 = vmatpush1.xpose.msra.mxu0 0.0
        %547 = vmatprep.subr.mxu0 0.0
        %548 = vmatpush1.xpose.msra.mxu0 0.0
        %549 = vmatprep.subr.mxu0 0.0
        %550 = vmatpush1.xpose.msra.mxu0 0.0
        %551 = vmatprep.subr.mxu0 0.0
        %552 = vmatpush1.xpose.msra.mxu0 0.0
        %553 = vmatprep.subr.mxu0 0.0
        %554 = vmatpush1.xpose.msra.mxu0 0.0
        %555 = vmatprep.subr.mxu0 0.0
        %556 = vmatpush1.xpose.msra.mxu0 0.0
        %557 = vmatprep.subr.mxu0 0.0
        %558 = vmatpush1.xpose.msra.mxu0 0.0
        %559 = vmatprep.subr.mxu0 0.0
        %560 = vmatpush1.xpose.msra.mxu0 0.0
        %561 = vmatprep.subr.mxu0 0.0
        %562 = vmatpush1.xpose.msra.mxu0 0.0
        %563 = vmatprep.subr.mxu0 0.0
        %564 = vmatpush1.xpose.msra.mxu0 0.0
        %565 = vmatprep.subr.mxu0 0.0
        %566 = vmatpush1.xpose.msra.mxu0 0.0
        %567 = vmatprep.subr.mxu0 0.0
        %568 = vmatpush1.xpose.msra.mxu0 0.0
        %569 = vmatprep.subr.mxu0 0.0
        %570 = vmatpush1.xpose.msra.mxu0 0.0
        %571 = vmatprep.subr.mxu0 0.0
        %572 = vmatpush1.xpose.msra.mxu0 0.0
        %573 = vmatprep.subr.mxu0 0.0
        %574 = vmatpush1.xpose.msra.mxu0 0.0
        %575 = vmatprep.subr.mxu0 0.0
        %576 = vmatpush1.xpose.msra.mxu0 0.0
        %577 = vmatprep.subr.mxu0 0.0
        %578 = vmatpush1.xpose.msra.mxu0 0.0
        %579 = vmatprep.subr.mxu0 0.0
        %580 = vmatpush1.xpose.msra.mxu0 0.0
        %581 = vmatprep.subr.mxu0 0.0
        %582 = vmatpush1.xpose.msra.mxu0 0.0
        %583 = vmatprep.subr.mxu0 0.0
        %584 = vmatpush1.xpose.msra.mxu0 0.0
        %585 = vmatprep.subr.mxu0 0.0
        %586 = vmatpush1.xpose.msra.mxu0 0.0
        %587 = vmatprep.subr.mxu0 0.0
        %588 = vmatpush1.xpose.msra.mxu0 0.0
        %589 = vmatprep.subr.mxu0 0.0
        %590 = vmatpush1.xpose.msra.mxu0 0.0
        %591 = vmatprep.subr.mxu0 0.0
        %592 = vmatpush1.xpose.msra.mxu0 0.0
        %593 = vmatprep.mubr.f32.mxu0 0.0
        %594 = vmatmul.mubr.f32.gmra.mrb[0].mxu0 %v525
        %v595 = vpop.f32.mrb[0].mxu0
        %v596 = vadd.f32 0.0, %v595
        %v597 = vpop.f32.mrb[0].mxu0
        %598 = vdwg.mxu0
        %599 = vrot.lane.b32.xlu0 %v521, 96
        %v600 = vpop.permute.xlu0 %599
        %v601 = vsel %vm524, %v521, 0
        %v603 = vsel %vm524, %v600, 0
        %605 = vmatprep.subr.mxu0 0.0
        %606 = vmatpush1.xpose.msra.mxu0 %v603
        %607 = vmatprep.subr.mxu0 0.0
        %608 = vmatpush1.xpose.msra.mxu0 0.0
        %609 = vmatprep.subr.mxu0 0.0
        %610 = vmatpush1.xpose.msra.mxu0 0.0
        %611 = vmatprep.subr.mxu0 0.0
        %612 = vmatpush1.xpose.msra.mxu0 0.0
        %613 = vmatprep.subr.mxu0 0.0
        %614 = vmatpush1.xpose.msra.mxu0 0.0
        %615 = vmatprep.subr.mxu0 0.0
        %616 = vmatpush1.xpose.msra.mxu0 0.0
        %617 = vmatprep.subr.mxu0 0.0
        %618 = vmatpush1.xpose.msra.mxu0 0.0
        %619 = vmatprep.subr.mxu0 0.0
        %620 = vmatpush1.xpose.msra.mxu0 0.0
        %621 = vmatprep.subr.mxu0 0.0
        %622 = vmatpush1.xpose.msra.mxu0 0.0
        %623 = vmatprep.subr.mxu0 0.0
        %624 = vmatpush1.xpose.msra.mxu0 0.0
        %625 = vmatprep.subr.mxu0 0.0
        %626 = vmatpush1.xpose.msra.mxu0 0.0
        %627 = vmatprep.subr.mxu0 0.0
        %628 = vmatpush1.xpose.msra.mxu0 0.0
        %629 = vmatprep.subr.mxu0 0.0
        %630 = vmatpush1.xpose.msra.mxu0 0.0
        %631 = vmatprep.subr.mxu0 0.0
        %632 = vmatpush1.xpose.msra.mxu0 0.0
        %633 = vmatprep.subr.mxu0 0.0
        %634 = vmatpush1.xpose.msra.mxu0 0.0
        %635 = vmatprep.subr.mxu0 0.0
        %636 = vmatpush1.xpose.msra.mxu0 0.0
        %637 = vmatprep.subr.mxu0 0.0
        %638 = vmatpush1.xpose.msra.mxu0 0.0
        %639 = vmatprep.subr.mxu0 0.0
        %640 = vmatpush1.xpose.msra.mxu0 0.0
        %641 = vmatprep.subr.mxu0 0.0
        %642 = vmatpush1.xpose.msra.mxu0 0.0
        %643 = vmatprep.subr.mxu0 0.0
        %644 = vmatpush1.xpose.msra.mxu0 0.0
        %645 = vmatprep.subr.mxu0 0.0
        %646 = vmatpush1.xpose.msra.mxu0 0.0
        %647 = vmatprep.subr.mxu0 0.0
        %648 = vmatpush1.xpose.msra.mxu0 0.0
        %649 = vmatprep.subr.mxu0 0.0
        %650 = vmatpush1.xpose.msra.mxu0 0.0
        %651 = vmatprep.subr.mxu0 0.0
        %652 = vmatpush1.xpose.msra.mxu0 0.0
        %653 = vmatprep.subr.mxu0 0.0
        %654 = vmatpush1.xpose.msra.mxu0 0.0
        %655 = vmatprep.subr.mxu0 0.0
        %656 = vmatpush1.xpose.msra.mxu0 0.0
        %657 = vmatprep.subr.mxu0 0.0
        %658 = vmatpush1.xpose.msra.mxu0 0.0
        %659 = vmatprep.subr.mxu0 0.0
        %660 = vmatpush1.xpose.msra.mxu0 0.0
        %661 = vmatprep.subr.mxu0 0.0
        %662 = vmatpush1.xpose.msra.mxu0 0.0
        %663 = vmatprep.subr.mxu0 0.0
        %664 = vmatpush1.xpose.msra.mxu0 0.0
        %665 = vmatprep.subr.mxu0 0.0
        %666 = vmatpush1.xpose.msra.mxu0 0.0
        %667 = vmatprep.subr.mxu0 0.0
        %668 = vmatpush1.xpose.msra.mxu0 0.0
        %669 = vmatprep.mubr.f32.mxu0 0.0
        %670 = vmatmul.mubr.f32.gmra.mrb[0].mxu0 %v601
        %v671 = vpop.f32.mrb[0].mxu0
        %v672 = vadd.f32 0.0, %v671
        %v673 = vpop.f32.mrb[0].mxu0
        %674 = vdwg.mxu0
        %v675 = vmul.f32 %v596, 0.25
        %v676 = vmul.f32 %v672, 0.25
        %vm677 = vcmask 64512
        %v678 = vsel %vm677, %v675, -inf
        %679 = vmax.xlane.f32.xlu0 %v678
        %v680 = vpop.xlane.xlu0 %679
        %v681 = vsel %vm677, %v676, -inf
        %682 = vmax.xlane.f32.xlu0 %v681
        %v683 = vpop.xlane.xlu0 %682
        %v684 = vsub.f32 %v675, %v680
        %v685 = vsub.f32 %v676, %v683
        %v686 = vmul.f32 %v684, 1.442695
        %v687 = vpow.pop %v686
        %v688 = vmul.f32 %v685, 1.442695
        %v689 = vpow.pop %v688
        %v690 = vsel %vm677, %v687, 0.0
        %691 = vadd.xlane.f32.xlu0 %v690
        %v692 = vpop.xlane.xlu0 %691
        %v693 = vsel %vm677, %v689, 0.0
        %694 = vadd.xlane.f32.xlu0 %v693
        %v695 = vpop.xlane.xlu0 %694
        %v696 = vrcp.pop %v692
        %v697 = vrcp.pop %v695
        %v698 = vmul.f32 %v687, %v696
        %v699 = vmul.f32 %v689, %v697
        %700 = vst.msk [vmem:[%s439] sm:$0xff] %vm677, %v698
        %701 = vst.msk [vmem:[%s439 + $0x8] sm:$0xff] %vm677, %v699
        %v702 = vsel %vm677, %v698, 0.0
        %703 = vadd.xlane.f32.xlu0 %v702
        %v704 = vpop.xlane.xlu0 %703
        %v705 = vsel %vm677, %v699, 0.0
        %706 = vadd.xlane.f32.xlu0 %v705
        %v707 = vpop.xlane.xlu0 %706
        %vm708 = vcmask 785920
        %v709 = vsel %vm708, %v516, 0.0
        %v710 = vrot.slane %v709, 4
        %v711 = vadd.f32 %v709, %v710
        %v712 = vrot.slane %v711, 2
        %v713 = vadd.f32 %v711, %v712
        %v714 = vrot.slane %v713, 1
        %v715 = vadd.f32 %v713, %v714
        %v716 = vmul.f32 %v704, %v715
        %v717 = vmul.f32 %v707, %v715
        %719 = vrot.lane.b32.xlu0 %v717, 112
        %v720 = vpop.permute.xlu0 %719
        %v721 = vlaneseq
        %v722 = vshrl.u32 %v721, 7
        %v723 = vlaneseq
        %v724 = vand.u32 %v723, 127
        %v725 = vmul.u32 %v722, 2
        %vm726 = vcmp.eq.s32.totalorder %v724, %v725
        %v727 = vsel %vm726, 1, 0
        %v728 = vcvt.s32.f32 %v727
        %730 = vrot.lane.b32.xlu0 %v716, 64
        %v731 = vpop.permute.xlu0 %730
        %732 = vrot.lane.b32.xlu0 %v720, 64
        %v733 = vpop.permute.xlu0 %732
        %v737 = vsel %vm524, %v728, 0
        %739 = vmatprep.subr.mxu0 0.0
        %740 = vmatpush1.msra.mxu0 %v731
        %741 = vmatprep.subr.mxu0 0.0
        %742 = vmatpush1.msra.mxu0 %v733
        %743 = vmatprep.subr.mxu0 0.0
        %744 = vmatpush1.msra.mxu0 0.0
        %745 = vmatprep.subr.mxu0 0.0
        %746 = vmatpush1.msra.mxu0 0.0
        %747 = vmatprep.subr.mxu0 0.0
        %748 = vmatpush1.msra.mxu0 0.0
        %749 = vmatprep.subr.mxu0 0.0
        %750 = vmatpush1.msra.mxu0 0.0
        %751 = vmatprep.subr.mxu0 0.0
        %752 = vmatpush1.msra.mxu0 0.0
        %753 = vmatprep.subr.mxu0 0.0
        %754 = vmatpush1.msra.mxu0 0.0
        %755 = vmatprep.subr.mxu0 0.0
        %756 = vmatpush1.msra.mxu0 0.0
        %757 = vmatprep.subr.mxu0 0.0
        %758 = vmatpush1.msra.mxu0 0.0
        %759 = vmatprep.subr.mxu0 0.0
        %760 = vmatpush1.msra.mxu0 0.0
        %761 = vmatprep.subr.mxu0 0.0
        %762 = vmatpush1.msra.mxu0 0.0
        %763 = vmatprep.subr.mxu0 0.0
        %764 = vmatpush1.msra.mxu0 0.0
        %765 = vmatprep.subr.mxu0 0.0
        %766 = vmatpush1.msra.mxu0 0.0
        %767 = vmatprep.subr.mxu0 0.0
        %768 = vmatpush1.msra.mxu0 0.0
        %769 = vmatprep.subr.mxu0 0.0
        %770 = vmatpush1.msra.mxu0 0.0
        %771 = vmatprep.subr.mxu0 0.0
        %772 = vmatpush1.msra.mxu0 0.0
        %773 = vmatprep.subr.mxu0 0.0
        %774 = vmatpush1.msra.mxu0 0.0
        %775 = vmatprep.subr.mxu0 0.0
        %776 = vmatpush1.msra.mxu0 0.0
        %777 = vmatprep.subr.mxu0 0.0
        %778 = vmatpush1.msra.mxu0 0.0
        %779 = vmatprep.subr.mxu0 0.0
        %780 = vmatpush1.msra.mxu0 0.0
        %781 = vmatprep.subr.mxu0 0.0
        %782 = vmatpush1.msra.mxu0 0.0
        %783 = vmatprep.subr.mxu0 0.0
        %784 = vmatpush1.msra.mxu0 0.0
        %785 = vmatprep.subr.mxu0 0.0
        %786 = vmatpush1.msra.mxu0 0.0
        %787 = vmatprep.subr.mxu0 0.0
        %788 = vmatpush1.msra.mxu0 0.0
        %789 = vmatprep.subr.mxu0 0.0
        %790 = vmatpush1.msra.mxu0 0.0
        %791 = vmatprep.subr.mxu0 0.0
        %792 = vmatpush1.msra.mxu0 0.0
        %793 = vmatprep.subr.mxu0 0.0
        %794 = vmatpush1.msra.mxu0 0.0
        %795 = vmatprep.subr.mxu0 0.0
        %796 = vmatpush1.msra.mxu0 0.0
        %797 = vmatprep.subr.mxu0 0.0
        %798 = vmatpush1.msra.mxu0 0.0
        %799 = vmatprep.subr.mxu0 0.0
        %800 = vmatpush1.msra.mxu0 0.0
        %801 = vmatprep.subr.mxu0 0.0
        %802 = vmatpush1.msra.mxu0 0.0
        %803 = vmatprep.mubr.f32.mxu0 0.0
        %804 = vmatmul.mubr.f32.gmra.mrb[0].mxu0 %v737
        %v805 = vpop.f32.mrb[0].mxu0
        %v806 = vadd.f32 0.0, %v805
        %v807 = vpop.f32.mrb[0].mxu0
        %808 = vdwg.mxu0
        %v809 = vadd.s32 %v725, 1
        %vm810 = vcmp.eq.s32.totalorder %v724, %v809
        %v811 = vsel %vm810, 1, 0
        %v812 = vcvt.s32.f32 %v811
        %v814 = vsel %vm524, %v812, 0
        %816 = vmatprep.subr.mxu0 0.0
        %817 = vmatpush1.msra.mxu0 %v731
        %818 = vmatprep.subr.mxu0 0.0
        %819 = vmatpush1.msra.mxu0 %v733
        %820 = vmatprep.subr.mxu0 0.0
        %821 = vmatpush1.msra.mxu0 0.0
        %822 = vmatprep.subr.mxu0 0.0
        %823 = vmatpush1.msra.mxu0 0.0
        %824 = vmatprep.subr.mxu0 0.0
        %825 = vmatpush1.msra.mxu0 0.0
        %826 = vmatprep.subr.mxu0 0.0
        %827 = vmatpush1.msra.mxu0 0.0
        %828 = vmatprep.subr.mxu0 0.0
        %829 = vmatpush1.msra.mxu0 0.0
        %830 = vmatprep.subr.mxu0 0.0
        %831 = vmatpush1.msra.mxu0 0.0
        %832 = vmatprep.subr.mxu0 0.0
        %833 = vmatpush1.msra.mxu0 0.0
        %834 = vmatprep.subr.mxu0 0.0
        %835 = vmatpush1.msra.mxu0 0.0
        %836 = vmatprep.subr.mxu0 0.0
        %837 = vmatpush1.msra.mxu0 0.0
        %838 = vmatprep.subr.mxu0 0.0
        %839 = vmatpush1.msra.mxu0 0.0
        %840 = vmatprep.subr.mxu0 0.0
        %841 = vmatpush1.msra.mxu0 0.0
        %842 = vmatprep.subr.mxu0 0.0
        %843 = vmatpush1.msra.mxu0 0.0
        %844 = vmatprep.subr.mxu0 0.0
        %845 = vmatpush1.msra.mxu0 0.0
        %846 = vmatprep.subr.mxu0 0.0
        %847 = vmatpush1.msra.mxu0 0.0
        %848 = vmatprep.subr.mxu0 0.0
        %849 = vmatpush1.msra.mxu0 0.0
        %850 = vmatprep.subr.mxu0 0.0
        %851 = vmatpush1.msra.mxu0 0.0
        %852 = vmatprep.subr.mxu0 0.0
        %853 = vmatpush1.msra.mxu0 0.0
        %854 = vmatprep.subr.mxu0 0.0
        %855 = vmatpush1.msra.mxu0 0.0
        %856 = vmatprep.subr.mxu0 0.0
        %857 = vmatpush1.msra.mxu0 0.0
        %858 = vmatprep.subr.mxu0 0.0
        %859 = vmatpush1.msra.mxu0 0.0
        %860 = vmatprep.subr.mxu0 0.0
        %861 = vmatpush1.msra.mxu0 0.0
        %862 = vmatprep.subr.mxu0 0.0
        %863 = vmatpush1.msra.mxu0 0.0
        %864 = vmatprep.subr.mxu0 0.0
        %865 = vmatpush1.msra.mxu0 0.0
        %866 = vmatprep.subr.mxu0 0.0
        %867 = vmatpush1.msra.mxu0 0.0
        %868 = vmatprep.subr.mxu0 0.0
        %869 = vmatpush1.msra.mxu0 0.0
        %870 = vmatprep.subr.mxu0 0.0
        %871 = vmatpush1.msra.mxu0 0.0
        %872 = vmatprep.subr.mxu0 0.0
        %873 = vmatpush1.msra.mxu0 0.0
        %874 = vmatprep.subr.mxu0 0.0
        %875 = vmatpush1.msra.mxu0 0.0
        %876 = vmatprep.subr.mxu0 0.0
        %877 = vmatpush1.msra.mxu0 0.0
        %878 = vmatprep.subr.mxu0 0.0
        %879 = vmatpush1.msra.mxu0 0.0
        %880 = vmatprep.mubr.f32.mxu0 0.0
        %881 = vmatmul.mubr.f32.gmra.mrb[0].mxu0 %v814
        %v882 = vpop.f32.mrb[0].mxu0
        %v883 = vadd.f32 0.0, %v882
        %v884 = vpop.f32.mrb[0].mxu0
        %885 = vdwg.mxu0
        %887 = vrot.lane.b32.xlu0 %v883, 16
        %v888 = vpop.permute.xlu0 %887
        %v890 = vsel %vm524, %v806, %v888
        %v891 = vld [vmem:[%s2] sm:$0xff]
        %v892 = vld [vmem:[%s2 + $0x8] sm:$0xff]
        %v893 = vld [vmem:[%s2 + $0x10] sm:$0xff]
        %v894 = vld [vmem:[%s2 + $0x18] sm:$0xff]
        %v896 = vsel %vm445, %v890, 0
        %898 = vmatprep.subr.mxu0 0.0
        %899 = vmatpush1.msra.mxu0 %v891
        %900 = vmatprep.subr.mxu0 0.0
        %901 = vmatpush1.msra.mxu0 %v892
        %902 = vmatprep.subr.mxu0 0.0
        %903 = vmatpush1.msra.mxu0 %v893
        %904 = vmatprep.subr.mxu0 0.0
        %905 = vmatpush1.msra.mxu0 %v894
        %906 = vmatprep.subr.mxu0 0.0
        %907 = vmatpush1.msra.mxu0 0.0
        %908 = vmatprep.subr.mxu0 0.0
        %909 = vmatpush1.msra.mxu0 0.0
        %910 = vmatprep.subr.mxu0 0.0
        %911 = vmatpush1.msra.mxu0 0.0
        %912 = vmatprep.subr.mxu0 0.0
        %913 = vmatpush1.msra.mxu0 0.0
        %914 = vmatprep.subr.mxu0 0.0
        %915 = vmatpush1.msra.mxu0 0.0
        %916 = vmatprep.subr.mxu0 0.0
        %917 = vmatpush1.msra.mxu0 0.0
        %918 = vmatprep.subr.mxu0 0.0
        %919 = vmatpush1.msra.mxu0 0.0
        %920 = vmatprep.subr.mxu0 0.0
        %921 = vmatpush1.msra.mxu0 0.0
        %922 = vmatprep.subr.mxu0 0.0
        %923 = vmatpush1.msra.mxu0 0.0
        %924 = vmatprep.subr.mxu0 0.0
        %925 = vmatpush1.msra.mxu0 0.0
        %926 = vmatprep.subr.mxu0 0.0
        %927 = vmatpush1.msra.mxu0 0.0
        %928 = vmatprep.subr.mxu0 0.0
        %929 = vmatpush1.msra.mxu0 0.0
        %930 = vmatprep.subr.mxu0 0.0
        %931 = vmatpush1.msra.mxu0 0.0
        %932 = vmatprep.subr.mxu0 0.0
        %933 = vmatpush1.msra.mxu0 0.0
        %934 = vmatprep.subr.mxu0 0.0
        %935 = vmatpush1.msra.mxu0 0.0
        %936 = vmatprep.subr.mxu0 0.0
        %937 = vmatpush1.msra.mxu0 0.0
        %938 = vmatprep.subr.mxu0 0.0
        %939 = vmatpush1.msra.mxu0 0.0
        %940 = vmatprep.subr.mxu0 0.0
        %941 = vmatpush1.msra.mxu0 0.0
        %942 = vmatprep.subr.mxu0 0.0
        %943 = vmatpush1.msra.mxu0 0.0
        %944 = vmatprep.subr.mxu0 0.0
        %945 = vmatpush1.msra.mxu0 0.0
        %946 = vmatprep.subr.mxu0 0.0
        %947 = vmatpush1.msra.mxu0 0.0
        %948 = vmatprep.subr.mxu0 0.0
        %949 = vmatpush1.msra.mxu0 0.0
        %950 = vmatprep.subr.mxu0 0.0
        %951 = vmatpush1.msra.mxu0 0.0
        %952 = vmatprep.subr.mxu0 0.0
        %953 = vmatpush1.msra.mxu0 0.0
        %954 = vmatprep.subr.mxu0 0.0
        %955 = vmatpush1.msra.mxu0 0.0
        %956 = vmatprep.subr.mxu0 0.0
        %957 = vmatpush1.msra.mxu0 0.0
        %958 = vmatprep.subr.mxu0 0.0
        %959 = vmatpush1.msra.mxu0 0.0
        %960 = vmatprep.subr.mxu0 0.0
        %961 = vmatpush1.msra.mxu0 0.0
        %962 = vmatprep.mubr.f32.mxu0 0.0
        %963 = vmatmul.mubr.f32.gmra.mrb[0].mxu0 %v896
        %v964 = vpop.f32.mrb[0].mxu0
        %v965 = vadd.f32 %v440, %v964
        %v966 = vpop.f32.mrb[0].mxu0
        %967 = vdwg.mxu0
        %v968 = vld [vmem:[%s7] sm:$0x1]
        %v969 = vld [vmem:[%s8] sm:$0x1]
        %v970 = vsel %vm445, %v965, 0.0
        %971 = vadd.xlane.f32.xlu0 %v970
        %v972 = vpop.xlane.xlu0 %971
        %v973 = vrcp.pop 32.0
        %v974 = vmul.f32 %v972, %v973
        %v975 = vsub.f32 %v965, %v974
        %v976 = vmul.f32 %v975, %v975
        %v977 = vsel %vm445, %v976, 0.0
        %978 = vadd.xlane.f32.xlu0 %v977
        %v979 = vpop.xlane.xlu0 %978
        %v980 = vmul.f32 %v979, %v973
        %v981 = vadd.f32 %v980, 1e-06
        %v982 = vrsqrt.pop %v981
        %v983 = vmul.f32 %v975, %v982
        %v985 = vlaneseq
        %v986 = vshrl.u32 %v985, 7
        %v987 = vsub.s32 0, %v986
        %v988 = vrot.slane %v968, %v987
        %v990 = vmul.f32 %v983, %v988
        %v992 = vlaneseq
        %v993 = vshrl.u32 %v992, 7
        %v994 = vsub.s32 0, %v993
        %v995 = vrot.slane %v969, %v994
        %v997 = vadd.f32 %v990, %v995
        %v998 = vld [vmem:[%s3] sm:$0xff]
        %v999 = vld [vmem:[%s3 + $0x8] sm:$0xff]
        %v1000 = vld [vmem:[%s3 + $0x10] sm:$0xff]
        %v1001 = vld [vmem:[%s3 + $0x18] sm:$0xff]
        %v1002 = vld [vmem:[%s4] sm:$0x1]
        %v1004 = vlaneseq
        %v1005 = vshrl.u32 %v1004, 7
        %v1006 = vsub.s32 0, %v1005
        %v1007 = vrot.slane %v1002, %v1006
        %v1010 = vsel %vm445, %v997, 0
        %1012 = vmatprep.subr.mxu0 0.0
        %1013 = vmatpush1.msra.mxu0 %v998
        %1014 = vmatprep.subr.mxu0 0.0
        %1015 = vmatpush1.msra.mxu0 %v999
        %1016 = vmatprep.subr.mxu0 0.0
        %1017 = vmatpush1.msra.mxu0 %v1000
        %1018 = vmatprep.subr.mxu0 0.0
        %1019 = vmatpush1.msra.mxu0 %v1001
        %1020 = vmatprep.subr.mxu0 0.0
        %1021 = vmatpush1.msra.mxu0 0.0
        %1022 = vmatprep.subr.mxu0 0.0
        %1023 = vmatpush1.msra.mxu0 0.0
        %1024 = vmatprep.subr.mxu0 0.0
        %1025 = vmatpush1.msra.mxu0 0.0
        %1026 = vmatprep.subr.mxu0 0.0
        %1027 = vmatpush1.msra.mxu0 0.0
        %1028 = vmatprep.subr.mxu0 0.0
        %1029 = vmatpush1.msra.mxu0 0.0
        %1030 = vmatprep.subr.mxu0 0.0
        %1031 = vmatpush1.msra.mxu0 0.0
        %1032 = vmatprep.subr.mxu0 0.0
        %1033 = vmatpush1.msra.mxu0 0.0
        %1034 = vmatprep.subr.mxu0 0.0
        %1035 = vmatpush1.msra.mxu0 0.0
        %1036 = vmatprep.subr.mxu0 0.0
        %1037 = vmatpush1.msra.mxu0 0.0
        %1038 = vmatprep.subr.mxu0 0.0
        %1039 = vmatpush1.msra.mxu0 0.0
        %1040 = vmatprep.subr.mxu0 0.0
        %1041 = vmatpush1.msra.mxu0 0.0
        %1042 = vmatprep.subr.mxu0 0.0
        %1043 = vmatpush1.msra.mxu0 0.0
        %1044 = vmatprep.subr.mxu0 0.0
        %1045 = vmatpush1.msra.mxu0 0.0
        %1046 = vmatprep.subr.mxu0 0.0
        %1047 = vmatpush1.msra.mxu0 0.0
        %1048 = vmatprep.subr.mxu0 0.0
        %1049 = vmatpush1.msra.mxu0 0.0
        %1050 = vmatprep.subr.mxu0 0.0
        %1051 = vmatpush1.msra.mxu0 0.0
        %1052 = vmatprep.subr.mxu0 0.0
        %1053 = vmatpush1.msra.mxu0 0.0
        %1054 = vmatprep.subr.mxu0 0.0
        %1055 = vmatpush1.msra.mxu0 0.0
        %1056 = vmatprep.subr.mxu0 0.0
        %1057 = vmatpush1.msra.mxu0 0.0
        %1058 = vmatprep.subr.mxu0 0.0
        %1059 = vmatpush1.msra.mxu0 0.0
        %1060 = vmatprep.subr.mxu0 0.0
        %1061 = vmatpush1.msra.mxu0 0.0
        %1062 = vmatprep.subr.mxu0 0.0
        %1063 = vmatpush1.msra.mxu0 0.0
        %1064 = vmatprep.subr.mxu0 0.0
        %1065 = vmatpush1.msra.mxu0 0.0
        %1066 = vmatprep.subr.mxu0 0.0
        %1067 = vmatpush1.msra.mxu0 0.0
        %1068 = vmatprep.subr.mxu0 0.0
        %1069 = vmatpush1.msra.mxu0 0.0
        %1070 = vmatprep.subr.mxu0 0.0
        %1071 = vmatpush1.msra.mxu0 0.0
        %1072 = vmatprep.subr.mxu0 0.0
        %1073 = vmatpush1.msra.mxu0 0.0
        %1074 = vmatprep.subr.mxu0 0.0
        %1075 = vmatpush1.msra.mxu0 0.0
        %1076 = vmatprep.mubr.f32.mxu0 0.0
        %1077 = vmatmul.mubr.f32.gmra.mrb[0].mxu0 %v1010
        %v1078 = vpop.f32.mrb[0].mxu0
        %v1079 = vadd.f32 %v1007, %v1078
        %v1080 = vpop.f32.mrb[0].mxu0
        %1081 = vdwg.mxu0
        %v1082 = vmax.f32 %v1079, 0.0
        %v1083 = vld [vmem:[%s5] sm:$0xff]
        %v1084 = vld [vmem:[%s5 + $0x8] sm:$0xff]
        %v1085 = vld [vmem:[%s5 + $0x10] sm:$0xff]
        %v1086 = vld [vmem:[%s5 + $0x18] sm:$0xff]
        %v1087 = vld [vmem:[%s5 + $0x20] sm:$0xff]
        %v1088 = vld [vmem:[%s5 + $0x28] sm:$0xff]
        %v1089 = vld [vmem:[%s5 + $0x30] sm:$0xff]
        %v1090 = vld [vmem:[%s5 + $0x38] sm:$0xff]
        %v1091 = vld [vmem:[%s6] sm:$0x1]
        %v1093 = vlaneseq
        %v1094 = vshrl.u32 %v1093, 7
        %v1095 = vsub.s32 0, %v1094
        %v1096 = vrot.slane %v1091, %v1095
        %vm1098 = vcmask 523264
        %v1100 = vsel %vm1098, %v1082, 0
        %1102 = vmatprep.subr.mxu0 0.0
        %1103 = vmatpush1.msra.mxu0 %v1083
        %1104 = vmatprep.subr.mxu0 0.0
        %1105 = vmatpush1.msra.mxu0 %v1084
        %1106 = vmatprep.subr.mxu0 0.0
        %1107 = vmatpush1.msra.mxu0 %v1085
        %1108 = vmatprep.subr.mxu0 0.0
        %1109 = vmatpush1.msra.mxu0 %v1086
        %1110 = vmatprep.subr.mxu0 0.0
        %1111 = vmatpush1.msra.mxu0 %v1087
        %1112 = vmatprep.subr.mxu0 0.0
        %1113 = vmatpush1.msra.mxu0 %v1088
        %1114 = vmatprep.subr.mxu0 0.0
        %1115 = vmatpush1.msra.mxu0 %v1089
        %1116 = vmatprep.subr.mxu0 0.0
        %1117 = vmatpush1.msra.mxu0 %v1090
        %1118 = vmatprep.subr.mxu0 0.0
        %1119 = vmatpush1.msra.mxu0 0.0
        %1120 = vmatprep.subr.mxu0 0.0
        %1121 = vmatpush1.msra.mxu0 0.0
        %1122 = vmatprep.subr.mxu0 0.0
        %1123 = vmatpush1.msra.mxu0 0.0
        %1124 = vmatprep.subr.mxu0 0.0
        %1125 = vmatpush1.msra.mxu0 0.0
        %1126 = vmatprep.subr.mxu0 0.0
        %1127 = vmatpush1.msra.mxu0 0.0
        %1128 = vmatprep.subr.mxu0 0.0
        %1129 = vmatpush1.msra.mxu0 0.0
        %1130 = vmatprep.subr.mxu0 0.0
        %1131 = vmatpush1.msra.mxu0 0.0
        %1132 = vmatprep.subr.mxu0 0.0
        %1133 = vmatpush1.msra.mxu0 0.0
        %1134 = vmatprep.subr.mxu0 0.0
        %1135 = vmatpush1.msra.mxu0 0.0
        %1136 = vmatprep.subr.mxu0 0.0
        %1137 = vmatpush1.msra.mxu0 0.0
        %1138 = vmatprep.subr.mxu0 0.0
        %1139 = vmatpush1.msra.mxu0 0.0
        %1140 = vmatprep.subr.mxu0 0.0
        %1141 = vmatpush1.msra.mxu0 0.0
        %1142 = vmatprep.subr.mxu0 0.0
        %1143 = vmatpush1.msra.mxu0 0.0
        %1144 = vmatprep.subr.mxu0 0.0
        %1145 = vmatpush1.msra.mxu0 0.0
        %1146 = vmatprep.subr.mxu0 0.0
        %1147 = vmatpush1.msra.mxu0 0.0
        %1148 = vmatprep.subr.mxu0 0.0
        %1149 = vmatpush1.msra.mxu0 0.0
        %1150 = vmatprep.subr.mxu0 0.0
        %1151 = vmatpush1.msra.mxu0 0.0
        %1152 = vmatprep.subr.mxu0 0.0
        %1153 = vmatpush1.msra.mxu0 0.0
        %1154 = vmatprep.subr.mxu0 0.0
        %1155 = vmatpush1.msra.mxu0 0.0
        %1156 = vmatprep.subr.mxu0 0.0
        %1157 = vmatpush1.msra.mxu0 0.0
        %1158 = vmatprep.subr.mxu0 0.0
        %1159 = vmatpush1.msra.mxu0 0.0
        %1160 = vmatprep.subr.mxu0 0.0
        %1161 = vmatpush1.msra.mxu0 0.0
        %1162 = vmatprep.subr.mxu0 0.0
        %1163 = vmatpush1.msra.mxu0 0.0
        %1164 = vmatprep.subr.mxu0 0.0
        %1165 = vmatpush1.msra.mxu0 0.0
        %1166 = vmatprep.mubr.f32.mxu0 0.0
        %1167 = vmatmul.mubr.f32.gmra.mrb[0].mxu0 %v1100
        %v1168 = vpop.f32.mrb[0].mxu0
        %v1169 = vadd.f32 %v1096, %v1168
        %v1170 = vpop.f32.mrb[0].mxu0
        %1171 = vdwg.mxu0
        %v1172 = vadd.f32 %v1169, %v997
        %v1173 = vld [vmem:[%s9] sm:$0x1]
        %v1174 = vld [vmem:[%s10] sm:$0x1]
        %v1175 = vsel %vm445, %v1172, 0.0
        %1176 = vadd.xlane.f32.xlu0 %v1175
        %v1177 = vpop.xlane.xlu0 %1176
        %v1178 = vmul.f32 %v1177, %v973
        %v1179 = vsub.f32 %v1172, %v1178
        %v1180 = vmul.f32 %v1179, %v1179
        %v1181 = vsel %vm445, %v1180, 0.0
        %1182 = vadd.xlane.f32.xlu0 %v1181
        %v1183 = vpop.xlane.xlu0 %1182
        %v1184 = vmul.f32 %v1183, %v973
        %v1185 = vadd.f32 %v1184, 1e-06
        %v1186 = vrsqrt.pop %v1185
        %v1187 = vmul.f32 %v1179, %v1186
        %v1189 = vlaneseq
        %v1190 = vshrl.u32 %v1189, 7
        %v1191 = vsub.s32 0, %v1190
        %v1192 = vrot.slane %v1173, %v1191
        %v1194 = vmul.f32 %v1187, %v1192
        %v1196 = vlaneseq
        %v1197 = vshrl.u32 %v1196, 7
        %v1198 = vsub.s32 0, %v1197
        %v1199 = vrot.slane %v1174, %v1198
        %v1201 = vadd.f32 %v1194, %v1199
        %1202 = vst.msk [vmem:[%s432] sm:$0xff] %vm445, %v1201
        %s1203 = sand.u32 %s277, 1
        %s1204 = scalar_lea.sflag [#allocation4], %s1203
        %s1205 = sand.u32 %s277, 1
        %s1206 = smul.addr %s1205, 8
        %s1207 = scalar_lea.vmem [#allocation5], %s1206
        %s1208 = sand.u32 %s303, 1
        %s1209 = scalar_lea.sflag [#allocation7], %s1208
        %s1210 = sand.u32 %s303, 1
        %s1211 = smul.addr %s1210, 16
        %s1212 = scalar_lea.vmem [#allocation6], %s1211
        // Predicated region
        $region69: #{tpu_custom_call.1} parent=63 // pred_check
          %p1213 = pneg %p287
        $region70: #{tpu_custom_call.1} parent=63 // pred_check_branch
          %1215 = sbr.rel (%p1213) target = $region72
        $region71: #{tpu_custom_call.1} parent=63 // pred_region
          %s1217 = ssub.s32 128, 128
          %1218 = vsyncadd %s1204, %s1217
          %s1219 = smul.addr %s33, 128
          %s1220 = scalar_lea.hbm %s11, %s1219
          %s1222 = sshll.u32 %s1207, 4
          %s1223 = int_to_ptr.vmem [resolvable:$true] %s1222
          %1225 = dma.vmem_to_hbm [thread:$0]  %s1223, 128, %s1220, %s1204
        $region72: #{tpu_custom_call.1} parent=63 // pred_fallthru
          _
        // Predicated region
        $region73: #{tpu_custom_call.1} parent=63 // pred_check
          %p1226 = pneg %p313
        $region74: #{tpu_custom_call.1} parent=63 // pred_check_branch
          %1228 = sbr.rel (%p1226) target = $region76
        $region75: #{tpu_custom_call.1} parent=63 // pred_region
          %s1230 = ssub.s32 256, 256
          %1231 = vsyncadd %s1209, %s1230
          %s1232 = smul.addr %s33, 2
          %s1233 = smul.addr %s1232, 128
          %s1234 = scalar_lea.hbm %s12, %s1233
          %s1235 = sshll.u32 %s1212, 4
          %s1236 = int_to_ptr.vmem [resolvable:$true] %s1235
          %1241 = dma.vmem_to_hbm [thread:$0]  %s1236, 256, %s1234, %s1209, 128, 128, 8
        $region76: #{tpu_custom_call.1} parent=63 // pred_fallthru
          _
      $region64: #{tpu_custom_call.1} parent=5 // pred_fallthru
        _
      %p1242 = scmp.le.s32.totalorder 2, %s28
      // Predicated region
      $region77: #{tpu_custom_call.1} parent=5 // pred_check
        %p1243 = pneg %p1242
      $region78: #{tpu_custom_call.1} parent=5 // pred_check_branch
        %1245 = sbr.rel (%p1243) target = $region80
      $region79: #{tpu_custom_call.1} parent=5 // pred_region
        %s1246 = ssub.s32 %s28, 2
        // Predicated region
        $region81: #{tpu_custom_call.1} parent=79 // pred_check
          %p1247 = pneg %p293
        $region82: #{tpu_custom_call.1} parent=79 // pred_check_branch
          %1249 = sbr.rel (%p1247) target = $region84
        $region83: #{tpu_custom_call.1} parent=79 // pred_region
          %s1250 = sand.u32 %s278, 1
          %s1251 = scalar_lea.sflag [#allocation4], %s1250
          %s1252 = sand.u32 %s278, 1
          %s1253 = smul.addr %s1252, 8
          %s1254 = scalar_lea.vmem [#allocation5], %s1253
          %1255 = dma.done %s1251, 128
        $region84: #{tpu_custom_call.1} parent=79 // pred_fallthru
          _
        // Predicated region
        $region85: #{tpu_custom_call.1} parent=79 // pred_check
          %p1256 = pneg %p319
        $region86: #{tpu_custom_call.1} parent=79 // pred_check_branch
          %1258 = sbr.rel (%p1256) target = $region88
        $region87: #{tpu_custom_call.1} parent=79 // pred_region
          %s1259 = sand.u32 %s304, 1
          %s1260 = scalar_lea.sflag [#allocation7], %s1259
          %s1261 = sand.u32 %s304, 1
          %s1262 = smul.addr %s1261, 16
          %s1263 = scalar_lea.vmem [#allocation6], %s1262
          %1264 = dma.done %s1260, 256
        $region88: #{tpu_custom_call.1} parent=79 // pred_fallthru
          _
      $region80: #{tpu_custom_call.1} parent=5 // pred_fallthru
        _
    $region6: #{tpu_custom_call.1} parent=1 // loop_footer
      %s32 = sadd.s32 1, %s28
    $region7: #{tpu_custom_call.1} parent=1 // loop_footer_branch
      %27 = sbr.rel target = $region3
    $region8: #{tpu_custom_call.1} parent=1 // loop_exit
      _
    %1265 = vsyncpa [#allocation3], 1
    %s1266 = scalar_lea.sflag [#allocation3], 1
    %1267 = vsyncpa %s1266, 1
    %1268 = vsyncpa [#allocation4], 1
    %s1269 = scalar_lea.sflag [#allocation4], 1
    %1270 = vsyncpa %s1269, 1
    %1271 = vsyncpa [#allocation7], 1
    %s1272 = scalar_lea.sflag [#allocation7], 1
    %1273 = vsyncpa %s1272, 1

</llo_original>
